<compile_context>
chip_gen: v5e
topology: v5e:2x2
jax: 0.10.0
libtpu: 0.0.40
codegen_flags: <defaults>
</compile_context>

<pallas_src>
import functools

import jax
import jax.numpy as jnp
from jax.experimental import pallas as pl
from jax.experimental.pallas import tpu as pltpu


def _round_up(x, m):
    return ((x + m - 1) // m) * m


# ----------------------------- fused kernel ---------------------------------
def _fused_kernel(x_ref, w_ref, b_ref, out_ref, gproj_ref, *, T, Bp, H, F_pad):
    """Whole forward pass: wavefront 3-layer LSTM over T steps + fc head.

    x_ref    : (T*Bp, F_pad) bf16  time-major input, batch padded to Bp,
                                   feature dim zero-padded to F_pad
    w_ref    : (F_pad + 6H, 4H) bf16  packed weight slab:
                 rows [0, F_pad)        W_ih^T  layer 0 (zero-padded rows)
                 rows [F_pad, +H)       W_hh^T  layer 0
                 next 2H rows           [W_ih^T ; W_hh^T]  layer 1
                 next 2H rows           [W_ih^T ; W_hh^T]  layer 2
                 last H rows            W_fc^T  (zero-padded to 4H lanes)
    b_ref    : (8, 4H) f32  rows 0..2 = combined LSTM biases, row 3 = fc bias
    out_ref  : (Bp, 4H) f32  fc output in lanes [0, nf), zeros elsewhere
    gproj_ref: (T*Bp, 4H) f32 scratch  hoisted layer-0 input projection
    """
    H4 = 4 * H

    # ---- static slices of the packed slabs (row offsets all % 16 == 0) -----
    o1 = F_pad
    o2 = o1 + H
    o3 = o2 + 2 * H
    o4 = o3 + 2 * H
    wih0 = w_ref[0:o1, :]          # (F_pad, 4H)
    whh0 = w_ref[o1:o2, :]         # (H, 4H)
    wcat1 = w_ref[o2:o3, :]        # (2H, 4H)  stacked [W_ih^T; W_hh^T]
    wcat2 = w_ref[o3:o4, :]        # (2H, 4H)
    wfc = w_ref[o4:o4 + H, :]      # (H, 4H)

    b0 = b_ref[0:1, :]
    # Hoisted sublane broadcasts (JAX does not CSE broadcast_in_dim in loops).
    b1 = jnp.broadcast_to(b_ref[1:2, :], (Bp, H4))
    b2 = jnp.broadcast_to(b_ref[2:3, :], (Bp, H4))
    bfc = b_ref[3:4, :]

    # ---- layer-0 input projection hoisted out of the recurrence ------------
    # TODO(synk): at production sizes (large T*Bp*4H) chunk this over time
    # tiles / keep bf16 so it fits v7x's 64 MiB VMEM; fine at toy sizes.
    gproj_ref[...] = (
        jnp.dot(x_ref[...], wih0, preferred_element_type=jnp.float32) + b0
    )

    # Lane mask for the g-gate range [2H, 3H); PyTorch gate order is i,f,g,o.
    lane = jax.lax.broadcasted_iota(jnp.int32, (Bp, H4), 1)
    g_lane = (lane >= 2 * H) & (lane < 3 * H)

    def cell_update(gates, c):
        # Single EUP transcendental for the whole gate block:
        #   sigmoid(x) = 0.5 * (1 + tanh(x / 2))
        pre = jnp.where(g_lane, gates, 0.5 * gates)
        th = jnp.tanh(pre)
        act = jnp.where(g_lane, th, 0.5 * th + 0.5)
        i_g = act[:, 0 * H:1 * H]
        f_g = act[:, 1 * H:2 * H]
        g_g = act[:, 2 * H:3 * H]
        o_g = act[:, 3 * H:4 * H]
        c_new = f_g * c + i_g * g_g              # cell state stays f32
        h_new = o_g * jnp.tanh(c_new)            # second (unavoidable) EUP op
        return h_new, c_new

    # ---- wavefront over the 3 layer recurrences -----------------------------
    # Superstep s: layer0@t=s, layer1@t=s-1, layer2@t=s-2; each step reads only
    # the previous superstep's states, so the 3 chains overlap.  T is a static
    # Python int -> fully unrolled (equivalent to fori_loop(..., unroll=True)).
    h0 = jnp.zeros((Bp, H), jnp.float32)
    h1 = jnp.zeros((Bp, H), jnp.float32)
    h2 = jnp.zeros((Bp, H), jnp.float32)
    c0 = jnp.zeros((Bp, H), jnp.float32)
    c1 = jnp.zeros((Bp, H), jnp.float32)
    c2 = jnp.zeros((Bp, H), jnp.float32)

    for s in range(T + 2):
        n0 = n1 = n2 = None
        if s < T:                                       # layer 0 @ t = s
            g0 = gproj_ref[s * Bp:(s + 1) * Bp, :] + jnp.dot(
                h0.astype(jnp.bfloat16), whh0,
                preferred_element_type=jnp.float32)
            n0 = cell_update(g0, c0)
        if 1 <= s <= T:                                 # layer 1 @ t = s - 1
            # [x_t, h_{t-1}] against stacked [W_ih^T; W_hh^T]: one MXU push.
            z1 = jnp.concatenate([h0, h1], axis=1).astype(jnp.bfloat16)
            g1 = jnp.dot(z1, wcat1, preferred_element_type=jnp.float32) + b1
            n1 = cell_update(g1, c1)
        if 2 <= s <= T + 1:                             # layer 2 @ t = s - 2
            z2 = jnp.concatenate([h1, h2], axis=1).astype(jnp.bfloat16)
            g2 = jnp.dot(z2, wcat2, preferred_element_type=jnp.float32) + b2
            n2 = cell_update(g2, c2)
        if n0 is not None:
            h0, c0 = n0
        if n1 is not None:
            h1, c1 = n1
        if n2 is not None:
            h2, c2 = n2

    # ---- fused fc head (lane-dense output store) ----------------------------
    # TODO(synk): nn.Dropout(p=0.2) and LSTM inter-layer dropout(0.1) are
    # identity in eval mode.
    out_ref[...] = (
        jnp.dot(h2.astype(jnp.bfloat16), wfc,
                preferred_element_type=jnp.float32)
        + bfc
    )


def _fused_forward_call(w_slab, b_slab, x_flat, *, T, Bp, H, F_pad):
    H4 = 4 * H
    kernel = functools.partial(_fused_kernel, T=T, Bp=Bp, H=H, F_pad=F_pad)
    # TODO(synk): for batched serving on v7x, add a batch-tile grid axis marked
    # "parallel" so work is sharded across both TensorCores; irrelevant at B=2.
    return pl.pallas_call(
        kernel,
        out_shape=jax.ShapeDtypeStruct((Bp, H4), jnp.float32),
        in_specs=[
            pl.BlockSpec(x_flat.shape, lambda: (0, 0)),
            pl.BlockSpec(w_slab.shape, lambda: (0, 0)),
            pl.BlockSpec(b_slab.shape, lambda: (0, 0)),
        ],
        out_specs=pl.BlockSpec((Bp, H4), lambda: (0, 0)),
        scratch_shapes=[
            pltpu.VMEM((T * Bp, H4), jnp.float32),   # hoisted layer-0 projection
        ],
    )(x_flat, w_slab, b_slab)


# ------------------------------ params & packing -----------------------------
def init_params(key, num_feature, hidden_size, num_layers=3):
    """PyTorch-style U(-1/sqrt(H), 1/sqrt(H)) init; stored as plain f32."""
    H = hidden_size
    k = 1.0 / jnp.sqrt(jnp.float32(H))
    lstm = []
    for layer in range(num_layers):
        f_in = num_feature if layer == 0 else H
        key, k1, k2, k3, k4 = jax.random.split(key, 5)
        lstm.append({
            "w_ih": jax.random.uniform(k1, (4 * H, f_in), jnp.float32, -k, k),
            "w_hh": jax.random.uniform(k2, (4 * H, H), jnp.float32, -k, k),
            "b_ih": jax.random.uniform(k3, (4 * H,), jnp.float32, -k, k),
            "b_hh": jax.random.uniform(k4, (4 * H,), jnp.float32, -k, k),
        })
    key, k1, k2 = jax.random.split(key, 3)
    fc = {"w": jax.random.uniform(k1, (num_feature, H), jnp.float32, -k, k),
          "b": jax.random.uniform(k2, (num_feature,), jnp.float32, -k, k)}
    return {"lstm": lstm, "fc": fc}


def pack_params(params):
    """Pack all weights into one bf16 slab and all biases into one f32 slab."""
    H = params["lstm"][0]["w_hh"].shape[1]
    H4 = 4 * H
    assert H % 16 == 0 and H4 % 128 == 0, "packed-slab layout assumes H % 32 == 0"
    nf = params["fc"]["w"].shape[0]
    F = params["lstm"][0]["w_ih"].shape[1]
    F_pad = _round_up(F, 16)

    p0 = params["lstm"][0]
    wih0 = jnp.zeros((F_pad, H4), jnp.float32).at[:F, :].set(p0["w_ih"].T)
    segs = [wih0, p0["w_hh"].T]
    for p in params["lstm"][1:]:
        segs.append(jnp.concatenate([p["w_ih"].T, p["w_hh"].T], axis=0))
    wfc = jnp.zeros((H, H4), jnp.float32).at[:, :nf].set(params["fc"]["w"].T)
    segs.append(wfc)
    w_slab = jnp.concatenate(segs, axis=0).astype(jnp.bfloat16)   # (F_pad+6H, 4H)

    b_slab = jnp.zeros((8, H4), jnp.float32)
    for i, p in enumerate(params["lstm"]):
        b_slab = b_slab.at[i, :].set(p["b_ih"] + p["b_hh"])
    b_slab = b_slab.at[3, :nf].set(params["fc"]["b"])
    return w_slab, b_slab


# ------------------------------ forward wrapper -------------------------------
@functools.partial(jax.jit, static_argnames=("nf",))
def neural_network_forward(w_slab, b_slab, x_btf, *, nf):
    """x_btf: (B, T, num_feature) batch_first input -> (B, num_feature)."""
    H4 = w_slab.shape[1]
    H = H4 // 4
    F_pad = w_slab.shape[0] - 6 * H

    x = x_btf.astype(jnp.float32)
    B, T, F = x.shape
    Bp = _round_up(B, 8)                          # full sublane groups
    x_tbf = jnp.transpose(x, (1, 0, 2))           # (T, B, F) time-major
    x_tbf = jnp.pad(x_tbf, ((0, 0), (0, Bp - B), (0, F_pad - F)))
    x_flat = x_tbf.reshape(T * Bp, F_pad).astype(jnp.bfloat16)

    out_p = _fused_forward_call(w_slab, b_slab, x_flat,
                                T=T, Bp=Bp, H=H, F_pad=F_pad)   # (Bp, 4H)
    return out_p[:B, :nf]


# ------------------------------ pure-JAX reference ----------------------------
def reference_forward(params, x):
    """f32 reference (weights rounded to bf16 to match kernel operands)."""
    def f32(w):
        return w.astype(jnp.bfloat16).astype(jnp.float32)

    h_seq = x.astype(jnp.float32)
    for p in params["lstm"]:
        w_ih, w_hh = f32(p["w_ih"]), f32(p["w_hh"])
        b = p["b_ih"] + p["b_hh"]
        B = h_seq.shape[0]
        Hs = w_hh.shape[1]

        def step(carry, x_t, w_ih=w_ih, w_hh=w_hh, b=b):
            hh, cc = carry
            gates = x_t @ w_ih.T + hh @ w_hh.T + b
            i, f, g, o = jnp.split(gates, 4, axis=-1)
            cc = jax.nn.sigmoid(f) * cc + jax.nn.sigmoid(i) * jnp.tanh(g)
            hh = jax.nn.sigmoid(o) * jnp.tanh(cc)
            return (hh, cc), hh

        init = (jnp.zeros((B, Hs), jnp.float32), jnp.zeros((B, Hs), jnp.float32))
        _, hs = jax.lax.scan(step, init, jnp.swapaxes(h_seq, 0, 1))
        h_seq = jnp.swapaxes(hs, 0, 1)
    last = h_seq[:, -1, :]
    return last @ f32(params["fc"]["w"]).T + params["fc"]["b"]


if __name__ == "__main__":
    num_feature = 4
    hidden_size = 32
    batch = 2
    seq_len = 8

    key = jax.random.PRNGKey(0)
    key, pkey, xkey = jax.random.split(key, 3)
    params = init_params(pkey, num_feature, hidden_size)
    w_slab, b_slab = pack_params(params)
    x = jax.random.normal(xkey, (batch, seq_len, num_feature), jnp.float32)

    out = neural_network_forward(w_slab, b_slab, x, nf=num_feature)
    jax.block_until_ready(out)
    assert out.shape == (batch, num_feature), out.shape

    ref = reference_forward(params, x)
    max_err = float(jnp.max(jnp.abs(out - ref)))
    assert max_err < 5e-2, f"max abs error vs f32 reference: {max_err}"

    print("KERNEL_OK")
</pallas_src>

<mosaic_0001>
module attributes {stable_mosaic.version = 11 : i64} {
  func.func @_fused_kernel(%arg0: memref<64x16xbf16, #tpu.memory_space<vmem>>, %arg1: memref<208x128xbf16, #tpu.memory_space<vmem>>, %arg2: memref<8x128xf32, #tpu.memory_space<vmem>>, %arg3: memref<8x128xf32, #tpu.memory_space<vmem>>, %arg4: memref<64x128xf32, #tpu.memory_space<vmem>>) attributes {dimension_semantics = [], scalar_prefetch = 0 : i64, scratch_operands = 1 : i64, tpu.core_type = #tpu.core_type<tc>} {
    %c0 = arith.constant 0 : index
    %c0_0 = arith.constant 0 : index
    %0 = vector.load %arg1[%c0, %c0_0] : memref<208x128xbf16, #tpu.memory_space<vmem>>, vector<16x128xbf16>
    %c16 = arith.constant 16 : index
    %c0_1 = arith.constant 0 : index
    %1 = vector.load %arg1[%c16, %c0_1] : memref<208x128xbf16, #tpu.memory_space<vmem>>, vector<32x128xbf16>
    %c48 = arith.constant 48 : index
    %c0_2 = arith.constant 0 : index
    %2 = vector.load %arg1[%c48, %c0_2] : memref<208x128xbf16, #tpu.memory_space<vmem>>, vector<64x128xbf16>
    %c112 = arith.constant 112 : index
    %c0_3 = arith.constant 0 : index
    %3 = vector.load %arg1[%c112, %c0_3] : memref<208x128xbf16, #tpu.memory_space<vmem>>, vector<64x128xbf16>
    %c176 = arith.constant 176 : index
    %c0_4 = arith.constant 0 : index
    %4 = vector.load %arg1[%c176, %c0_4] : memref<208x128xbf16, #tpu.memory_space<vmem>>, vector<32x128xbf16>
    %c0_5 = arith.constant 0 : index
    %c0_6 = arith.constant 0 : index
    %5 = vector.load %arg2[%c0_5, %c0_6] : memref<8x128xf32, #tpu.memory_space<vmem>>, vector<1x128xf32>
    %c1 = arith.constant 1 : index
    %c0_7 = arith.constant 0 : index
    %6 = vector.load %arg2[%c1, %c0_7] : memref<8x128xf32, #tpu.memory_space<vmem>>, vector<1x128xf32>
    %7 = vector.shape_cast %6 : vector<1x128xf32> to vector<1x128xf32>
    %8 = vector.broadcast %7 : vector<1x128xf32> to vector<8x128xf32>
    %c2 = arith.constant 2 : index
    %c0_8 = arith.constant 0 : index
    %9 = vector.load %arg2[%c2, %c0_8] : memref<8x128xf32, #tpu.memory_space<vmem>>, vector<1x128xf32>
    %10 = vector.shape_cast %9 : vector<1x128xf32> to vector<1x128xf32>
    %11 = vector.broadcast %10 : vector<1x128xf32> to vector<8x128xf32>
    %c3 = arith.constant 3 : index
    %c0_9 = arith.constant 0 : index
    %12 = vector.load %arg2[%c3, %c0_9] : memref<8x128xf32, #tpu.memory_space<vmem>>, vector<1x128xf32>
    %c0_10 = arith.constant 0 : index
    %c0_11 = arith.constant 0 : index
    %13 = vector.load %arg0[%c0_10, %c0_11] : memref<64x16xbf16, #tpu.memory_space<vmem>>, vector<64x16xbf16>
    %cst = arith.constant dense<0.000000e+00> : vector<64x128xf32>
    %14 = tpu.matmul %13, %0, %cst {dimension_numbers = #tpu.dot_dimension_numbers<[1], [0], [0], [1], [0, 0, 1, 1], [], []>} : vector<64x16xbf16>, vector<16x128xbf16>, vector<64x128xf32> -> vector<64x128xf32>
    %15 = vector.broadcast %5 : vector<1x128xf32> to vector<64x128xf32>
    %16 = arith.addf %14, %15 : vector<64x128xf32>
    %c0_12 = arith.constant 0 : index
    %c0_13 = arith.constant 0 : index
    %17 = vector.load %arg4[%c0_12, %c0_13] : memref<64x128xf32, #tpu.memory_space<vmem>>, vector<64x128xf32>
    tpu.vector_store %arg4[%c0_12, %c0_13], %16 {strides = array<i32>} : memref<64x128xf32, #tpu.memory_space<vmem>>, vector<64x128xf32>,
    %18 = tpu.iota {dimensions = array<i32: 1>} : vector<8x128xi32>
    %c64_i32 = arith.constant 64 : i32
    %19 = vector.broadcast %c64_i32 : i32 to vector<8x128xi32>
    %20 = arith.cmpi sge, %18, %19 : vector<8x128xi32>
    %c96_i32 = arith.constant 96 : i32
    %21 = vector.broadcast %c96_i32 : i32 to vector<8x128xi32>
    %22 = arith.cmpi slt, %18, %21 : vector<8x128xi32>
    %23 = arith.andi %20, %22 : vector<8x128xi1>
    %cst_14 = arith.constant 0.000000e+00 : f32
    %24 = vector.broadcast %cst_14 : f32 to vector<8x32xf32>
    %cst_15 = arith.constant 0.000000e+00 : f32
    %25 = vector.broadcast %cst_15 : f32 to vector<8x32xf32>
    %cst_16 = arith.constant 0.000000e+00 : f32
    %26 = vector.broadcast %cst_16 : f32 to vector<8x32xf32>
    %cst_17 = arith.constant 0.000000e+00 : f32
    %27 = vector.broadcast %cst_17 : f32 to vector<8x32xf32>
    %cst_18 = arith.constant 0.000000e+00 : f32
    %28 = vector.broadcast %cst_18 : f32 to vector<8x32xf32>
    %cst_19 = arith.constant 0.000000e+00 : f32
    %29 = vector.broadcast %cst_19 : f32 to vector<8x32xf32>
    %c0_20 = arith.constant 0 : index
    %c0_21 = arith.constant 0 : index
    %30 = vector.load %arg4[%c0_20, %c0_21] : memref<64x128xf32, #tpu.memory_space<vmem>>, vector<8x128xf32>
    %31 = arith.truncf %24 : vector<8x32xf32> to vector<8x32xbf16>
    %cst_22 = arith.constant dense<0.000000e+00> : vector<8x128xf32>
    %32 = tpu.matmul %31, %1, %cst_22 {dimension_numbers = #tpu.dot_dimension_numbers<[1], [0], [0], [1], [0, 0, 1, 1], [], []>} : vector<8x32xbf16>, vector<32x128xbf16>, vector<8x128xf32> -> vector<8x128xf32>
    %33 = arith.addf %30, %32 : vector<8x128xf32>
    %cst_23 = arith.constant 5.000000e-01 : f32
    %34 = vector.broadcast %cst_23 : f32 to vector<8x128xf32>
    %35 = arith.mulf %34, %33 : vector<8x128xf32>
    %36 = arith.select %23, %33, %35 : vector<8x128xi1>, vector<8x128xf32>
    %37 = math.tanh %36 : vector<8x128xf32>
    %cst_24 = arith.constant 5.000000e-01 : f32
    %38 = vector.broadcast %cst_24 : f32 to vector<8x128xf32>
    %39 = arith.mulf %38, %37 : vector<8x128xf32>
    %cst_25 = arith.constant 5.000000e-01 : f32
    %40 = vector.broadcast %cst_25 : f32 to vector<8x128xf32>
    %41 = arith.addf %39, %40 : vector<8x128xf32>
    %42 = arith.select %23, %37, %41 : vector<8x128xi1>, vector<8x128xf32>
    %43 = vector.extract_strided_slice %42 {offsets = [0, 0], sizes = [8, 32], strides = [1, 1]} : vector<8x128xf32> to vector<8x32xf32>
    %44 = vector.extract_strided_slice %42 {offsets = [0, 32], sizes = [8, 32], strides = [1, 1]} : vector<8x128xf32> to vector<8x32xf32>
    %45 = vector.extract_strided_slice %42 {offsets = [0, 64], sizes = [8, 32], strides = [1, 1]} : vector<8x128xf32> to vector<8x32xf32>
    %46 = vector.extract_strided_slice %42 {offsets = [0, 96], sizes = [8, 32], strides = [1, 1]} : vector<8x128xf32> to vector<8x32xf32>
    %47 = arith.mulf %44, %27 : vector<8x32xf32>
    %48 = arith.mulf %43, %45 : vector<8x32xf32>
    %49 = arith.addf %47, %48 : vector<8x32xf32>
    %50 = math.tanh %49 : vector<8x32xf32>
    %51 = arith.mulf %46, %50 : vector<8x32xf32>
    %c8 = arith.constant 8 : index
    %c0_26 = arith.constant 0 : index
    %52 = vector.load %arg4[%c8, %c0_26] : memref<64x128xf32, #tpu.memory_space<vmem>>, vector<8x128xf32>
    %53 = arith.truncf %51 : vector<8x32xf32> to vector<8x32xbf16>
    %cst_27 = arith.constant dense<0.000000e+00> : vector<8x128xf32>
    %54 = tpu.matmul %53, %1, %cst_27 {dimension_numbers = #tpu.dot_dimension_numbers<[1], [0], [0], [1], [0, 0, 1, 1], [], []>} : vector<8x32xbf16>, vector<32x128xbf16>, vector<8x128xf32> -> vector<8x128xf32>
    %55 = arith.addf %52, %54 : vector<8x128xf32>
    %cst_28 = arith.constant 5.000000e-01 : f32
    %56 = vector.broadcast %cst_28 : f32 to vector<8x128xf32>
    %57 = arith.mulf %56, %55 : vector<8x128xf32>
    %58 = arith.select %23, %55, %57 : vector<8x128xi1>, vector<8x128xf32>
    %59 = math.tanh %58 : vector<8x128xf32>
    %cst_29 = arith.constant 5.000000e-01 : f32
    %60 = vector.broadcast %cst_29 : f32 to vector<8x128xf32>
    %61 = arith.mulf %60, %59 : vector<8x128xf32>
    %cst_30 = arith.constant 5.000000e-01 : f32
    %62 = vector.broadcast %cst_30 : f32 to vector<8x128xf32>
    %63 = arith.addf %61, %62 : vector<8x128xf32>
    %64 = arith.select %23, %59, %63 : vector<8x128xi1>, vector<8x128xf32>
    %65 = vector.extract_strided_slice %64 {offsets = [0, 0], sizes = [8, 32], strides = [1, 1]} : vector<8x128xf32> to vector<8x32xf32>
    %66 = vector.extract_strided_slice %64 {offsets = [0, 32], sizes = [8, 32], strides = [1, 1]} : vector<8x128xf32> to vector<8x32xf32>
    %67 = vector.extract_strided_slice %64 {offsets = [0, 64], sizes = [8, 32], strides = [1, 1]} : vector<8x128xf32> to vector<8x32xf32>
    %68 = vector.extract_strided_slice %64 {offsets = [0, 96], sizes = [8, 32], strides = [1, 1]} : vector<8x128xf32> to vector<8x32xf32>
    %69 = arith.mulf %66, %49 : vector<8x32xf32>
    %70 = arith.mulf %65, %67 : vector<8x32xf32>
    %71 = arith.addf %69, %70 : vector<8x32xf32>
    %72 = math.tanh %71 : vector<8x32xf32>
    %73 = arith.mulf %68, %72 : vector<8x32xf32>
    %74 = tpu.concatenate %51, %25 in 1 : vector<8x32xf32>, vector<8x32xf32> -> vector<8x64xf32>
    %75 = arith.truncf %74 : vector<8x64xf32> to vector<8x64xbf16>
    %cst_31 = arith.constant dense<0.000000e+00> : vector<8x128xf32>
    %76 = tpu.matmul %75, %2, %cst_31 {dimension_numbers = #tpu.dot_dimension_numbers<[1], [0], [0], [1], [0, 0, 1, 1], [], []>} : vector<8x64xbf16>, vector<64x128xbf16>, vector<8x128xf32> -> vector<8x128xf32>
    %77 = arith.addf %76, %8 : vector<8x128xf32>
    %cst_32 = arith.constant 5.000000e-01 : f32
    %78 = vector.broadcast %cst_32 : f32 to vector<8x128xf32>
    %79 = arith.mulf %78, %77 : vector<8x128xf32>
    %80 = arith.select %23, %77, %79 : vector<8x128xi1>, vector<8x128xf32>
    %81 = math.tanh %80 : vector<8x128xf32>
    %cst_33 = arith.constant 5.000000e-01 : f32
    %82 = vector.broadcast %cst_33 : f32 to vector<8x128xf32>
    %83 = arith.mulf %82, %81 : vector<8x128xf32>
    %cst_34 = arith.constant 5.000000e-01 : f32
    %84 = vector.broadcast %cst_34 : f32 to vector<8x128xf32>
    %85 = arith.addf %83, %84 : vector<8x128xf32>
    %86 = arith.select %23, %81, %85 : vector<8x128xi1>, vector<8x128xf32>
    %87 = vector.extract_strided_slice %86 {offsets = [0, 0], sizes = [8, 32], strides = [1, 1]} : vector<8x128xf32> to vector<8x32xf32>
    %88 = vector.extract_strided_slice %86 {offsets = [0, 32], sizes = [8, 32], strides = [1, 1]} : vector<8x128xf32> to vector<8x32xf32>
    %89 = vector.extract_strided_slice %86 {offsets = [0, 64], sizes = [8, 32], strides = [1, 1]} : vector<8x128xf32> to vector<8x32xf32>
    %90 = vector.extract_strided_slice %86 {offsets = [0, 96], sizes = [8, 32], strides = [1, 1]} : vector<8x128xf32> to vector<8x32xf32>
    %91 = arith.mulf %88, %28 : vector<8x32xf32>
    %92 = arith.mulf %87, %89 : vector<8x32xf32>
    %93 = arith.addf %91, %92 : vector<8x32xf32>
    %94 = math.tanh %93 : vector<8x32xf32>
    %95 = arith.mulf %90, %94 : vector<8x32xf32>
    %c16_35 = arith.constant 16 : index
    %c0_36 = arith.constant 0 : index
    %96 = vector.load %arg4[%c16_35, %c0_36] : memref<64x128xf32, #tpu.memory_space<vmem>>, vector<8x128xf32>
    %97 = arith.truncf %73 : vector<8x32xf32> to vector<8x32xbf16>
    %cst_37 = arith.constant dense<0.000000e+00> : vector<8x128xf32>
    %98 = tpu.matmul %97, %1, %cst_37 {dimension_numbers = #tpu.dot_dimension_numbers<[1], [0], [0], [1], [0, 0, 1, 1], [], []>} : vector<8x32xbf16>, vector<32x128xbf16>, vector<8x128xf32> -> vector<8x128xf32>
    %99 = arith.addf %96, %98 : vector<8x128xf32>
    %cst_38 = arith.constant 5.000000e-01 : f32
    %100 = vector.broadcast %cst_38 : f32 to vector<8x128xf32>
    %101 = arith.mulf %100, %99 : vector<8x128xf32>
    %102 = arith.select %23, %99, %101 : vector<8x128xi1>, vector<8x128xf32>
    %103 = math.tanh %102 : vector<8x128xf32>
    %cst_39 = arith.constant 5.000000e-01 : f32
    %104 = vector.broadcast %cst_39 : f32 to vector<8x128xf32>
    %105 = arith.mulf %104, %103 : vector<8x128xf32>
    %cst_40 = arith.constant 5.000000e-01 : f32
    %106 = vector.broadcast %cst_40 : f32 to vector<8x128xf32>
    %107 = arith.addf %105, %106 : vector<8x128xf32>
    %108 = arith.select %23, %103, %107 : vector<8x128xi1>, vector<8x128xf32>
    %109 = vector.extract_strided_slice %108 {offsets = [0, 0], sizes = [8, 32], strides = [1, 1]} : vector<8x128xf32> to vector<8x32xf32>
    %110 = vector.extract_strided_slice %108 {offsets = [0, 32], sizes = [8, 32], strides = [1, 1]} : vector<8x128xf32> to vector<8x32xf32>
    %111 = vector.extract_strided_slice %108 {offsets = [0, 64], sizes = [8, 32], strides = [1, 1]} : vector<8x128xf32> to vector<8x32xf32>
    %112 = vector.extract_strided_slice %108 {offsets = [0, 96], sizes = [8, 32], strides = [1, 1]} : vector<8x128xf32> to vector<8x32xf32>
    %113 = arith.mulf %110, %71 : vector<8x32xf32>
    %114 = arith.mulf %109, %111 : vector<8x32xf32>
    %115 = arith.addf %113, %114 : vector<8x32xf32>
    %116 = math.tanh %115 : vector<8x32xf32>
    %117 = arith.mulf %112, %116 : vector<8x32xf32>
    %118 = tpu.concatenate %73, %95 in 1 : vector<8x32xf32>, vector<8x32xf32> -> vector<8x64xf32>
    %119 = arith.truncf %118 : vector<8x64xf32> to vector<8x64xbf16>
    %cst_41 = arith.constant dense<0.000000e+00> : vector<8x128xf32>
    %120 = tpu.matmul %119, %2, %cst_41 {dimension_numbers = #tpu.dot_dimension_numbers<[1], [0], [0], [1], [0, 0, 1, 1], [], []>} : vector<8x64xbf16>, vector<64x128xbf16>, vector<8x128xf32> -> vector<8x128xf32>
    %121 = arith.addf %120, %8 : vector<8x128xf32>
    %cst_42 = arith.constant 5.000000e-01 : f32
    %122 = vector.broadcast %cst_42 : f32 to vector<8x128xf32>
    %123 = arith.mulf %122, %121 : vector<8x128xf32>
    %124 = arith.select %23, %121, %123 : vector<8x128xi1>, vector<8x128xf32>
    %125 = math.tanh %124 : vector<8x128xf32>
    %cst_43 = arith.constant 5.000000e-01 : f32
    %126 = vector.broadcast %cst_43 : f32 to vector<8x128xf32>
    %127 = arith.mulf %126, %125 : vector<8x128xf32>
    %cst_44 = arith.constant 5.000000e-01 : f32
    %128 = vector.broadcast %cst_44 : f32 to vector<8x128xf32>
    %129 = arith.addf %127, %128 : vector<8x128xf32>
    %130 = arith.select %23, %125, %129 : vector<8x128xi1>, vector<8x128xf32>
    %131 = vector.extract_strided_slice %130 {offsets = [0, 0], sizes = [8, 32], strides = [1, 1]} : vector<8x128xf32> to vector<8x32xf32>
    %132 = vector.extract_strided_slice %130 {offsets = [0, 32], sizes = [8, 32], strides = [1, 1]} : vector<8x128xf32> to vector<8x32xf32>
    %133 = vector.extract_strided_slice %130 {offsets = [0, 64], sizes = [8, 32], strides = [1, 1]} : vector<8x128xf32> to vector<8x32xf32>
    %134 = vector.extract_strided_slice %130 {offsets = [0, 96], sizes = [8, 32], strides = [1, 1]} : vector<8x128xf32> to vector<8x32xf32>
    %135 = arith.mulf %132, %93 : vector<8x32xf32>
    %136 = arith.mulf %131, %133 : vector<8x32xf32>
    %137 = arith.addf %135, %136 : vector<8x32xf32>
    %138 = math.tanh %137 : vector<8x32xf32>
    %139 = arith.mulf %134, %138 : vector<8x32xf32>
    %140 = tpu.concatenate %95, %26 in 1 : vector<8x32xf32>, vector<8x32xf32> -> vector<8x64xf32>
    %141 = arith.truncf %140 : vector<8x64xf32> to vector<8x64xbf16>
    %cst_45 = arith.constant dense<0.000000e+00> : vector<8x128xf32>
    %142 = tpu.matmul %141, %3, %cst_45 {dimension_numbers = #tpu.dot_dimension_numbers<[1], [0], [0], [1], [0, 0, 1, 1], [], []>} : vector<8x64xbf16>, vector<64x128xbf16>, vector<8x128xf32> -> vector<8x128xf32>
    %143 = arith.addf %142, %11 : vector<8x128xf32>
    %cst_46 = arith.constant 5.000000e-01 : f32
    %144 = vector.broadcast %cst_46 : f32 to vector<8x128xf32>
    %145 = arith.mulf %144, %143 : vector<8x128xf32>
    %146 = arith.select %23, %143, %145 : vector<8x128xi1>, vector<8x128xf32>
    %147 = math.tanh %146 : vector<8x128xf32>
    %cst_47 = arith.constant 5.000000e-01 : f32
    %148 = vector.broadcast %cst_47 : f32 to vector<8x128xf32>
    %149 = arith.mulf %148, %147 : vector<8x128xf32>
    %cst_48 = arith.constant 5.000000e-01 : f32
    %150 = vector.broadcast %cst_48 : f32 to vector<8x128xf32>
    %151 = arith.addf %149, %150 : vector<8x128xf32>
    %152 = arith.select %23, %147, %151 : vector<8x128xi1>, vector<8x128xf32>
    %153 = vector.extract_strided_slice %152 {offsets = [0, 0], sizes = [8, 32], strides = [1, 1]} : vector<8x128xf32> to vector<8x32xf32>
    %154 = vector.extract_strided_slice %152 {offsets = [0, 32], sizes = [8, 32], strides = [1, 1]} : vector<8x128xf32> to vector<8x32xf32>
    %155 = vector.extract_strided_slice %152 {offsets = [0, 64], sizes = [8, 32], strides = [1, 1]} : vector<8x128xf32> to vector<8x32xf32>
    %156 = vector.extract_strided_slice %152 {offsets = [0, 96], sizes = [8, 32], strides = [1, 1]} : vector<8x128xf32> to vector<8x32xf32>
    %157 = arith.mulf %154, %29 : vector<8x32xf32>
    %158 = arith.mulf %153, %155 : vector<8x32xf32>
    %159 = arith.addf %157, %158 : vector<8x32xf32>
    %160 = math.tanh %159 : vector<8x32xf32>
    %161 = arith.mulf %156, %160 : vector<8x32xf32>
    %c24 = arith.constant 24 : index
    %c0_49 = arith.constant 0 : index
    %162 = vector.load %arg4[%c24, %c0_49] : memref<64x128xf32, #tpu.memory_space<vmem>>, vector<8x128xf32>
    %163 = arith.truncf %117 : vector<8x32xf32> to vector<8x32xbf16>
    %cst_50 = arith.constant dense<0.000000e+00> : vector<8x128xf32>
    %164 = tpu.matmul %163, %1, %cst_50 {dimension_numbers = #tpu.dot_dimension_numbers<[1], [0], [0], [1], [0, 0, 1, 1], [], []>} : vector<8x32xbf16>, vector<32x128xbf16>, vector<8x128xf32> -> vector<8x128xf32>
    %165 = arith.addf %162, %164 : vector<8x128xf32>
    %cst_51 = arith.constant 5.000000e-01 : f32
    %166 = vector.broadcast %cst_51 : f32 to vector<8x128xf32>
    %167 = arith.mulf %166, %165 : vector<8x128xf32>
    %168 = arith.select %23, %165, %167 : vector<8x128xi1>, vector<8x128xf32>
    %169 = math.tanh %168 : vector<8x128xf32>
    %cst_52 = arith.constant 5.000000e-01 : f32
    %170 = vector.broadcast %cst_52 : f32 to vector<8x128xf32>
    %171 = arith.mulf %170, %169 : vector<8x128xf32>
    %cst_53 = arith.constant 5.000000e-01 : f32
    %172 = vector.broadcast %cst_53 : f32 to vector<8x128xf32>
    %173 = arith.addf %171, %172 : vector<8x128xf32>
    %174 = arith.select %23, %169, %173 : vector<8x128xi1>, vector<8x128xf32>
    %175 = vector.extract_strided_slice %174 {offsets = [0, 0], sizes = [8, 32], strides = [1, 1]} : vector<8x128xf32> to vector<8x32xf32>
    %176 = vector.extract_strided_slice %174 {offsets = [0, 32], sizes = [8, 32], strides = [1, 1]} : vector<8x128xf32> to vector<8x32xf32>
    %177 = vector.extract_strided_slice %174 {offsets = [0, 64], sizes = [8, 32], strides = [1, 1]} : vector<8x128xf32> to vector<8x32xf32>
    %178 = vector.extract_strided_slice %174 {offsets = [0, 96], sizes = [8, 32], strides = [1, 1]} : vector<8x128xf32> to vector<8x32xf32>
    %179 = arith.mulf %176, %115 : vector<8x32xf32>
    %180 = arith.mulf %175, %177 : vector<8x32xf32>
    %181 = arith.addf %179, %180 : vector<8x32xf32>
    %182 = math.tanh %181 : vector<8x32xf32>
    %183 = arith.mulf %178, %182 : vector<8x32xf32>
    %184 = tpu.concatenate %117, %139 in 1 : vector<8x32xf32>, vector<8x32xf32> -> vector<8x64xf32>
    %185 = arith.truncf %184 : vector<8x64xf32> to vector<8x64xbf16>
    %cst_54 = arith.constant dense<0.000000e+00> : vector<8x128xf32>
    %186 = tpu.matmul %185, %2, %cst_54 {dimension_numbers = #tpu.dot_dimension_numbers<[1], [0], [0], [1], [0, 0, 1, 1], [], []>} : vector<8x64xbf16>, vector<64x128xbf16>, vector<8x128xf32> -> vector<8x128xf32>
    %187 = arith.addf %186, %8 : vector<8x128xf32>
    %cst_55 = arith.constant 5.000000e-01 : f32
    %188 = vector.broadcast %cst_55 : f32 to vector<8x128xf32>
    %189 = arith.mulf %188, %187 : vector<8x128xf32>
    %190 = arith.select %23, %187, %189 : vector<8x128xi1>, vector<8x128xf32>
    %191 = math.tanh %190 : vector<8x128xf32>
    %cst_56 = arith.constant 5.000000e-01 : f32
    %192 = vector.broadcast %cst_56 : f32 to vector<8x128xf32>
    %193 = arith.mulf %192, %191 : vector<8x128xf32>
    %cst_57 = arith.constant 5.000000e-01 : f32
    %194 = vector.broadcast %cst_57 : f32 to vector<8x128xf32>
    %195 = arith.addf %193, %194 : vector<8x128xf32>
    %196 = arith.select %23, %191, %195 : vector<8x128xi1>, vector<8x128xf32>
    %197 = vector.extract_strided_slice %196 {offsets = [0, 0], sizes = [8, 32], strides = [1, 1]} : vector<8x128xf32> to vector<8x32xf32>
    %198 = vector.extract_strided_slice %196 {offsets = [0, 32], sizes = [8, 32], strides = [1, 1]} : vector<8x128xf32> to vector<8x32xf32>
    %199 = vector.extract_strided_slice %196 {offsets = [0, 64], sizes = [8, 32], strides = [1, 1]} : vector<8x128xf32> to vector<8x32xf32>
    %200 = vector.extract_strided_slice %196 {offsets = [0, 96], sizes = [8, 32], strides = [1, 1]} : vector<8x128xf32> to vector<8x32xf32>
    %201 = arith.mulf %198, %137 : vector<8x32xf32>
    %202 = arith.mulf %197, %199 : vector<8x32xf32>
    %203 = arith.addf %201, %202 : vector<8x32xf32>
    %204 = math.tanh %203 : vector<8x32xf32>
    %205 = arith.mulf %200, %204 : vector<8x32xf32>
    %206 = tpu.concatenate %139, %161 in 1 : vector<8x32xf32>, vector<8x32xf32> -> vector<8x64xf32>
    %207 = arith.truncf %206 : vector<8x64xf32> to vector<8x64xbf16>
    %cst_58 = arith.constant dense<0.000000e+00> : vector<8x128xf32>
    %208 = tpu.matmul %207, %3, %cst_58 {dimension_numbers = #tpu.dot_dimension_numbers<[1], [0], [0], [1], [0, 0, 1, 1], [], []>} : vector<8x64xbf16>, vector<64x128xbf16>, vector<8x128xf32> -> vector<8x128xf32>
    %209 = arith.addf %208, %11 : vector<8x128xf32>
    %cst_59 = arith.constant 5.000000e-01 : f32
    %210 = vector.broadcast %cst_59 : f32 to vector<8x128xf32>
    %211 = arith.mulf %210, %209 : vector<8x128xf32>
    %212 = arith.select %23, %209, %211 : vector<8x128xi1>, vector<8x128xf32>
    %213 = math.tanh %212 : vector<8x128xf32>
    %cst_60 = arith.constant 5.000000e-01 : f32
    %214 = vector.broadcast %cst_60 : f32 to vector<8x128xf32>
    %215 = arith.mulf %214, %213 : vector<8x128xf32>
    %cst_61 = arith.constant 5.000000e-01 : f32
    %216 = vector.broadcast %cst_61 : f32 to vector<8x128xf32>
    %217 = arith.addf %215, %216 : vector<8x128xf32>
    %218 = arith.select %23, %213, %217 : vector<8x128xi1>, vector<8x128xf32>
    %219 = vector.extract_strided_slice %218 {offsets = [0, 0], sizes = [8, 32], strides = [1, 1]} : vector<8x128xf32> to vector<8x32xf32>
    %220 = vector.extract_strided_slice %218 {offsets = [0, 32], sizes = [8, 32], strides = [1, 1]} : vector<8x128xf32> to vector<8x32xf32>
    %221 = vector.extract_strided_slice %218 {offsets = [0, 64], sizes = [8, 32], strides = [1, 1]} : vector<8x128xf32> to vector<8x32xf32>
    %222 = vector.extract_strided_slice %218 {offsets = [0, 96], sizes = [8, 32], strides = [1, 1]} : vector<8x128xf32> to vector<8x32xf32>
    %223 = arith.mulf %220, %159 : vector<8x32xf32>
    %224 = arith.mulf %219, %221 : vector<8x32xf32>
    %225 = arith.addf %223, %224 : vector<8x32xf32>
    %226 = math.tanh %225 : vector<8x32xf32>
    %227 = arith.mulf %222, %226 : vector<8x32xf32>
    %c32 = arith.constant 32 : index
    %c0_62 = arith.constant 0 : index
    %228 = vector.load %arg4[%c32, %c0_62] : memref<64x128xf32, #tpu.memory_space<vmem>>, vector<8x128xf32>
    %229 = arith.truncf %183 : vector<8x32xf32> to vector<8x32xbf16>
    %cst_63 = arith.constant dense<0.000000e+00> : vector<8x128xf32>
    %230 = tpu.matmul %229, %1, %cst_63 {dimension_numbers = #tpu.dot_dimension_numbers<[1], [0], [0], [1], [0, 0, 1, 1], [], []>} : vector<8x32xbf16>, vector<32x128xbf16>, vector<8x128xf32> -> vector<8x128xf32>
    %231 = arith.addf %228, %230 : vector<8x128xf32>
    %cst_64 = arith.constant 5.000000e-01 : f32
    %232 = vector.broadcast %cst_64 : f32 to vector<8x128xf32>
    %233 = arith.mulf %232, %231 : vector<8x128xf32>
    %234 = arith.select %23, %231, %233 : vector<8x128xi1>, vector<8x128xf32>
    %235 = math.tanh %234 : vector<8x128xf32>
    %cst_65 = arith.constant 5.000000e-01 : f32
    %236 = vector.broadcast %cst_65 : f32 to vector<8x128xf32>
    %237 = arith.mulf %236, %235 : vector<8x128xf32>
    %cst_66 = arith.constant 5.000000e-01 : f32
    %238 = vector.broadcast %cst_66 : f32 to vector<8x128xf32>
    %239 = arith.addf %237, %238 : vector<8x128xf32>
    %240 = arith.select %23, %235, %239 : vector<8x128xi1>, vector<8x128xf32>
    %241 = vector.extract_strided_slice %240 {offsets = [0, 0], sizes = [8, 32], strides = [1, 1]} : vector<8x128xf32> to vector<8x32xf32>
    %242 = vector.extract_strided_slice %240 {offsets = [0, 32], sizes = [8, 32], strides = [1, 1]} : vector<8x128xf32> to vector<8x32xf32>
    %243 = vector.extract_strided_slice %240 {offsets = [0, 64], sizes = [8, 32], strides = [1, 1]} : vector<8x128xf32> to vector<8x32xf32>
    %244 = vector.extract_strided_slice %240 {offsets = [0, 96], sizes = [8, 32], strides = [1, 1]} : vector<8x128xf32> to vector<8x32xf32>
    %245 = arith.mulf %242, %181 : vector<8x32xf32>
    %246 = arith.mulf %241, %243 : vector<8x32xf32>
    %247 = arith.addf %245, %246 : vector<8x32xf32>
    %248 = math.tanh %247 : vector<8x32xf32>
    %249 = arith.mulf %244, %248 : vector<8x32xf32>
    %250 = tpu.concatenate %183, %205 in 1 : vector<8x32xf32>, vector<8x32xf32> -> vector<8x64xf32>
    %251 = arith.truncf %250 : vector<8x64xf32> to vector<8x64xbf16>
    %cst_67 = arith.constant dense<0.000000e+00> : vector<8x128xf32>
    %252 = tpu.matmul %251, %2, %cst_67 {dimension_numbers = #tpu.dot_dimension_numbers<[1], [0], [0], [1], [0, 0, 1, 1], [], []>} : vector<8x64xbf16>, vector<64x128xbf16>, vector<8x128xf32> -> vector<8x128xf32>
    %253 = arith.addf %252, %8 : vector<8x128xf32>
    %cst_68 = arith.constant 5.000000e-01 : f32
    %254 = vector.broadcast %cst_68 : f32 to vector<8x128xf32>
    %255 = arith.mulf %254, %253 : vector<8x128xf32>
    %256 = arith.select %23, %253, %255 : vector<8x128xi1>, vector<8x128xf32>
    %257 = math.tanh %256 : vector<8x128xf32>
    %cst_69 = arith.constant 5.000000e-01 : f32
    %258 = vector.broadcast %cst_69 : f32 to vector<8x128xf32>
    %259 = arith.mulf %258, %257 : vector<8x128xf32>
    %cst_70 = arith.constant 5.000000e-01 : f32
    %260 = vector.broadcast %cst_70 : f32 to vector<8x128xf32>
    %261 = arith.addf %259, %260 : vector<8x128xf32>
    %262 = arith.select %23, %257, %261 : vector<8x128xi1>, vector<8x128xf32>
    %263 = vector.extract_strided_slice %262 {offsets = [0, 0], sizes = [8, 32], strides = [1, 1]} : vector<8x128xf32> to vector<8x32xf32>
    %264 = vector.extract_strided_slice %262 {offsets = [0, 32], sizes = [8, 32], strides = [1, 1]} : vector<8x128xf32> to vector<8x32xf32>
    %265 = vector.extract_strided_slice %262 {offsets = [0, 64], sizes = [8, 32], strides = [1, 1]} : vector<8x128xf32> to vector<8x32xf32>
    %266 = vector.extract_strided_slice %262 {offsets = [0, 96], sizes = [8, 32], strides = [1, 1]} : vector<8x128xf32> to vector<8x32xf32>
    %267 = arith.mulf %264, %203 : vector<8x32xf32>
    %268 = arith.mulf %263, %265 : vector<8x32xf32>
    %269 = arith.addf %267, %268 : vector<8x32xf32>
    %270 = math.tanh %269 : vector<8x32xf32>
    %271 = arith.mulf %266, %270 : vector<8x32xf32>
    %272 = tpu.concatenate %205, %227 in 1 : vector<8x32xf32>, vector<8x32xf32> -> vector<8x64xf32>
    %273 = arith.truncf %272 : vector<8x64xf32> to vector<8x64xbf16>
    %cst_71 = arith.constant dense<0.000000e+00> : vector<8x128xf32>
    %274 = tpu.matmul %273, %3, %cst_71 {dimension_numbers = #tpu.dot_dimension_numbers<[1], [0], [0], [1], [0, 0, 1, 1], [], []>} : vector<8x64xbf16>, vector<64x128xbf16>, vector<8x128xf32> -> vector<8x128xf32>
    %275 = arith.addf %274, %11 : vector<8x128xf32>
    %cst_72 = arith.constant 5.000000e-01 : f32
    %276 = vector.broadcast %cst_72 : f32 to vector<8x128xf32>
    %277 = arith.mulf %276, %275 : vector<8x128xf32>
    %278 = arith.select %23, %275, %277 : vector<8x128xi1>, vector<8x128xf32>
    %279 = math.tanh %278 : vector<8x128xf32>
    %cst_73 = arith.constant 5.000000e-01 : f32
    %280 = vector.broadcast %cst_73 : f32 to vector<8x128xf32>
    %281 = arith.mulf %280, %279 : vector<8x128xf32>
    %cst_74 = arith.constant 5.000000e-01 : f32
    %282 = vector.broadcast %cst_74 : f32 to vector<8x128xf32>
    %283 = arith.addf %281, %282 : vector<8x128xf32>
    %284 = arith.select %23, %279, %283 : vector<8x128xi1>, vector<8x128xf32>
    %285 = vector.extract_strided_slice %284 {offsets = [0, 0], sizes = [8, 32], strides = [1, 1]} : vector<8x128xf32> to vector<8x32xf32>
    %286 = vector.extract_strided_slice %284 {offsets = [0, 32], sizes = [8, 32], strides = [1, 1]} : vector<8x128xf32> to vector<8x32xf32>
    %287 = vector.extract_strided_slice %284 {offsets = [0, 64], sizes = [8, 32], strides = [1, 1]} : vector<8x128xf32> to vector<8x32xf32>
    %288 = vector.extract_strided_slice %284 {offsets = [0, 96], sizes = [8, 32], strides = [1, 1]} : vector<8x128xf32> to vector<8x32xf32>
    %289 = arith.mulf %286, %225 : vector<8x32xf32>
    %290 = arith.mulf %285, %287 : vector<8x32xf32>
    %291 = arith.addf %289, %290 : vector<8x32xf32>
    %292 = math.tanh %291 : vector<8x32xf32>
    %293 = arith.mulf %288, %292 : vector<8x32xf32>
    %c40 = arith.constant 40 : index
    %c0_75 = arith.constant 0 : index
    %294 = vector.load %arg4[%c40, %c0_75] : memref<64x128xf32, #tpu.memory_space<vmem>>, vector<8x128xf32>
    %295 = arith.truncf %249 : vector<8x32xf32> to vector<8x32xbf16>
    %cst_76 = arith.constant dense<0.000000e+00> : vector<8x128xf32>
    %296 = tpu.matmul %295, %1, %cst_76 {dimension_numbers = #tpu.dot_dimension_numbers<[1], [0], [0], [1], [0, 0, 1, 1], [], []>} : vector<8x32xbf16>, vector<32x128xbf16>, vector<8x128xf32> -> vector<8x128xf32>
    %297 = arith.addf %294, %296 : vector<8x128xf32>
    %cst_77 = arith.constant 5.000000e-01 : f32
    %298 = vector.broadcast %cst_77 : f32 to vector<8x128xf32>
    %299 = arith.mulf %298, %297 : vector<8x128xf32>
    %300 = arith.select %23, %297, %299 : vector<8x128xi1>, vector<8x128xf32>
    %301 = math.tanh %300 : vector<8x128xf32>
    %cst_78 = arith.constant 5.000000e-01 : f32
    %302 = vector.broadcast %cst_78 : f32 to vector<8x128xf32>
    %303 = arith.mulf %302, %301 : vector<8x128xf32>
    %cst_79 = arith.constant 5.000000e-01 : f32
    %304 = vector.broadcast %cst_79 : f32 to vector<8x128xf32>
    %305 = arith.addf %303, %304 : vector<8x128xf32>
    %306 = arith.select %23, %301, %305 : vector<8x128xi1>, vector<8x128xf32>
    %307 = vector.extract_strided_slice %306 {offsets = [0, 0], sizes = [8, 32], strides = [1, 1]} : vector<8x128xf32> to vector<8x32xf32>
    %308 = vector.extract_strided_slice %306 {offsets = [0, 32], sizes = [8, 32], strides = [1, 1]} : vector<8x128xf32> to vector<8x32xf32>
    %309 = vector.extract_strided_slice %306 {offsets = [0, 64], sizes = [8, 32], strides = [1, 1]} : vector<8x128xf32> to vector<8x32xf32>
    %310 = vector.extract_strided_slice %306 {offsets = [0, 96], sizes = [8, 32], strides = [1, 1]} : vector<8x128xf32> to vector<8x32xf32>
    %311 = arith.mulf %308, %247 : vector<8x32xf32>
    %312 = arith.mulf %307, %309 : vector<8x32xf32>
    %313 = arith.addf %311, %312 : vector<8x32xf32>
    %314 = math.tanh %313 : vector<8x32xf32>
    %315 = arith.mulf %310, %314 : vector<8x32xf32>
    %316 = tpu.concatenate %249, %271 in 1 : vector<8x32xf32>, vector<8x32xf32> -> vector<8x64xf32>
    %317 = arith.truncf %316 : vector<8x64xf32> to vector<8x64xbf16>
    %cst_80 = arith.constant dense<0.000000e+00> : vector<8x128xf32>
    %318 = tpu.matmul %317, %2, %cst_80 {dimension_numbers = #tpu.dot_dimension_numbers<[1], [0], [0], [1], [0, 0, 1, 1], [], []>} : vector<8x64xbf16>, vector<64x128xbf16>, vector<8x128xf32> -> vector<8x128xf32>
    %319 = arith.addf %318, %8 : vector<8x128xf32>
    %cst_81 = arith.constant 5.000000e-01 : f32
    %320 = vector.broadcast %cst_81 : f32 to vector<8x128xf32>
    %321 = arith.mulf %320, %319 : vector<8x128xf32>
    %322 = arith.select %23, %319, %321 : vector<8x128xi1>, vector<8x128xf32>
    %323 = math.tanh %322 : vector<8x128xf32>
    %cst_82 = arith.constant 5.000000e-01 : f32
    %324 = vector.broadcast %cst_82 : f32 to vector<8x128xf32>
    %325 = arith.mulf %324, %323 : vector<8x128xf32>
    %cst_83 = arith.constant 5.000000e-01 : f32
    %326 = vector.broadcast %cst_83 : f32 to vector<8x128xf32>
    %327 = arith.addf %325, %326 : vector<8x128xf32>
    %328 = arith.select %23, %323, %327 : vector<8x128xi1>, vector<8x128xf32>
    %329 = vector.extract_strided_slice %328 {offsets = [0, 0], sizes = [8, 32], strides = [1, 1]} : vector<8x128xf32> to vector<8x32xf32>
    %330 = vector.extract_strided_slice %328 {offsets = [0, 32], sizes = [8, 32], strides = [1, 1]} : vector<8x128xf32> to vector<8x32xf32>
    %331 = vector.extract_strided_slice %328 {offsets = [0, 64], sizes = [8, 32], strides = [1, 1]} : vector<8x128xf32> to vector<8x32xf32>
    %332 = vector.extract_strided_slice %328 {offsets = [0, 96], sizes = [8, 32], strides = [1, 1]} : vector<8x128xf32> to vector<8x32xf32>
    %333 = arith.mulf %330, %269 : vector<8x32xf32>
    %334 = arith.mulf %329, %331 : vector<8x32xf32>
    %335 = arith.addf %333, %334 : vector<8x32xf32>
    %336 = math.tanh %335 : vector<8x32xf32>
    %337 = arith.mulf %332, %336 : vector<8x32xf32>
    %338 = tpu.concatenate %271, %293 in 1 : vector<8x32xf32>, vector<8x32xf32> -> vector<8x64xf32>
    %339 = arith.truncf %338 : vector<8x64xf32> to vector<8x64xbf16>
    %cst_84 = arith.constant dense<0.000000e+00> : vector<8x128xf32>
    %340 = tpu.matmul %339, %3, %cst_84 {dimension_numbers = #tpu.dot_dimension_numbers<[1], [0], [0], [1], [0, 0, 1, 1], [], []>} : vector<8x64xbf16>, vector<64x128xbf16>, vector<8x128xf32> -> vector<8x128xf32>
    %341 = arith.addf %340, %11 : vector<8x128xf32>
    %cst_85 = arith.constant 5.000000e-01 : f32
    %342 = vector.broadcast %cst_85 : f32 to vector<8x128xf32>
    %343 = arith.mulf %342, %341 : vector<8x128xf32>
    %344 = arith.select %23, %341, %343 : vector<8x128xi1>, vector<8x128xf32>
    %345 = math.tanh %344 : vector<8x128xf32>
    %cst_86 = arith.constant 5.000000e-01 : f32
    %346 = vector.broadcast %cst_86 : f32 to vector<8x128xf32>
    %347 = arith.mulf %346, %345 : vector<8x128xf32>
    %cst_87 = arith.constant 5.000000e-01 : f32
    %348 = vector.broadcast %cst_87 : f32 to vector<8x128xf32>
    %349 = arith.addf %347, %348 : vector<8x128xf32>
    %350 = arith.select %23, %345, %349 : vector<8x128xi1>, vector<8x128xf32>
    %351 = vector.extract_strided_slice %350 {offsets = [0, 0], sizes = [8, 32], strides = [1, 1]} : vector<8x128xf32> to vector<8x32xf32>
    %352 = vector.extract_strided_slice %350 {offsets = [0, 32], sizes = [8, 32], strides = [1, 1]} : vector<8x128xf32> to vector<8x32xf32>
    %353 = vector.extract_strided_slice %350 {offsets = [0, 64], sizes = [8, 32], strides = [1, 1]} : vector<8x128xf32> to vector<8x32xf32>
    %354 = vector.extract_strided_slice %350 {offsets = [0, 96], sizes = [8, 32], strides = [1, 1]} : vector<8x128xf32> to vector<8x32xf32>
    %355 = arith.mulf %352, %291 : vector<8x32xf32>
    %356 = arith.mulf %351, %353 : vector<8x32xf32>
    %357 = arith.addf %355, %356 : vector<8x32xf32>
    %358 = math.tanh %357 : vector<8x32xf32>
    %359 = arith.mulf %354, %358 : vector<8x32xf32>
    %c48_88 = arith.constant 48 : index
    %c0_89 = arith.constant 0 : index
    %360 = vector.load %arg4[%c48_88, %c0_89] : memref<64x128xf32, #tpu.memory_space<vmem>>, vector<8x128xf32>
    %361 = arith.truncf %315 : vector<8x32xf32> to vector<8x32xbf16>
    %cst_90 = arith.constant dense<0.000000e+00> : vector<8x128xf32>
    %362 = tpu.matmul %361, %1, %cst_90 {dimension_numbers = #tpu.dot_dimension_numbers<[1], [0], [0], [1], [0, 0, 1, 1], [], []>} : vector<8x32xbf16>, vector<32x128xbf16>, vector<8x128xf32> -> vector<8x128xf32>
    %363 = arith.addf %360, %362 : vector<8x128xf32>
    %cst_91 = arith.constant 5.000000e-01 : f32
    %364 = vector.broadcast %cst_91 : f32 to vector<8x128xf32>
    %365 = arith.mulf %364, %363 : vector<8x128xf32>
    %366 = arith.select %23, %363, %365 : vector<8x128xi1>, vector<8x128xf32>
    %367 = math.tanh %366 : vector<8x128xf32>
    %cst_92 = arith.constant 5.000000e-01 : f32
    %368 = vector.broadcast %cst_92 : f32 to vector<8x128xf32>
    %369 = arith.mulf %368, %367 : vector<8x128xf32>
    %cst_93 = arith.constant 5.000000e-01 : f32
    %370 = vector.broadcast %cst_93 : f32 to vector<8x128xf32>
    %371 = arith.addf %369, %370 : vector<8x128xf32>
    %372 = arith.select %23, %367, %371 : vector<8x128xi1>, vector<8x128xf32>
    %373 = vector.extract_strided_slice %372 {offsets = [0, 0], sizes = [8, 32], strides = [1, 1]} : vector<8x128xf32> to vector<8x32xf32>
    %374 = vector.extract_strided_slice %372 {offsets = [0, 32], sizes = [8, 32], strides = [1, 1]} : vector<8x128xf32> to vector<8x32xf32>
    %375 = vector.extract_strided_slice %372 {offsets = [0, 64], sizes = [8, 32], strides = [1, 1]} : vector<8x128xf32> to vector<8x32xf32>
    %376 = vector.extract_strided_slice %372 {offsets = [0, 96], sizes = [8, 32], strides = [1, 1]} : vector<8x128xf32> to vector<8x32xf32>
    %377 = arith.mulf %374, %313 : vector<8x32xf32>
    %378 = arith.mulf %373, %375 : vector<8x32xf32>
    %379 = arith.addf %377, %378 : vector<8x32xf32>
    %380 = math.tanh %379 : vector<8x32xf32>
    %381 = arith.mulf %376, %380 : vector<8x32xf32>
    %382 = tpu.concatenate %315, %337 in 1 : vector<8x32xf32>, vector<8x32xf32> -> vector<8x64xf32>
    %383 = arith.truncf %382 : vector<8x64xf32> to vector<8x64xbf16>
    %cst_94 = arith.constant dense<0.000000e+00> : vector<8x128xf32>
    %384 = tpu.matmul %383, %2, %cst_94 {dimension_numbers = #tpu.dot_dimension_numbers<[1], [0], [0], [1], [0, 0, 1, 1], [], []>} : vector<8x64xbf16>, vector<64x128xbf16>, vector<8x128xf32> -> vector<8x128xf32>
    %385 = arith.addf %384, %8 : vector<8x128xf32>
    %cst_95 = arith.constant 5.000000e-01 : f32
    %386 = vector.broadcast %cst_95 : f32 to vector<8x128xf32>
    %387 = arith.mulf %386, %385 : vector<8x128xf32>
    %388 = arith.select %23, %385, %387 : vector<8x128xi1>, vector<8x128xf32>
    %389 = math.tanh %388 : vector<8x128xf32>
    %cst_96 = arith.constant 5.000000e-01 : f32
    %390 = vector.broadcast %cst_96 : f32 to vector<8x128xf32>
    %391 = arith.mulf %390, %389 : vector<8x128xf32>
    %cst_97 = arith.constant 5.000000e-01 : f32
    %392 = vector.broadcast %cst_97 : f32 to vector<8x128xf32>
    %393 = arith.addf %391, %392 : vector<8x128xf32>
    %394 = arith.select %23, %389, %393 : vector<8x128xi1>, vector<8x128xf32>
    %395 = vector.extract_strided_slice %394 {offsets = [0, 0], sizes = [8, 32], strides = [1, 1]} : vector<8x128xf32> to vector<8x32xf32>
    %396 = vector.extract_strided_slice %394 {offsets = [0, 32], sizes = [8, 32], strides = [1, 1]} : vector<8x128xf32> to vector<8x32xf32>
    %397 = vector.extract_strided_slice %394 {offsets = [0, 64], sizes = [8, 32], strides = [1, 1]} : vector<8x128xf32> to vector<8x32xf32>
    %398 = vector.extract_strided_slice %394 {offsets = [0, 96], sizes = [8, 32], strides = [1, 1]} : vector<8x128xf32> to vector<8x32xf32>
    %399 = arith.mulf %396, %335 : vector<8x32xf32>
    %400 = arith.mulf %395, %397 : vector<8x32xf32>
    %401 = arith.addf %399, %400 : vector<8x32xf32>
    %402 = math.tanh %401 : vector<8x32xf32>
    %403 = arith.mulf %398, %402 : vector<8x32xf32>
    %404 = tpu.concatenate %337, %359 in 1 : vector<8x32xf32>, vector<8x32xf32> -> vector<8x64xf32>
    %405 = arith.truncf %404 : vector<8x64xf32> to vector<8x64xbf16>
    %cst_98 = arith.constant dense<0.000000e+00> : vector<8x128xf32>
    %406 = tpu.matmul %405, %3, %cst_98 {dimension_numbers = #tpu.dot_dimension_numbers<[1], [0], [0], [1], [0, 0, 1, 1], [], []>} : vector<8x64xbf16>, vector<64x128xbf16>, vector<8x128xf32> -> vector<8x128xf32>
    %407 = arith.addf %406, %11 : vector<8x128xf32>
    %cst_99 = arith.constant 5.000000e-01 : f32
    %408 = vector.broadcast %cst_99 : f32 to vector<8x128xf32>
    %409 = arith.mulf %408, %407 : vector<8x128xf32>
    %410 = arith.select %23, %407, %409 : vector<8x128xi1>, vector<8x128xf32>
    %411 = math.tanh %410 : vector<8x128xf32>
    %cst_100 = arith.constant 5.000000e-01 : f32
    %412 = vector.broadcast %cst_100 : f32 to vector<8x128xf32>
    %413 = arith.mulf %412, %411 : vector<8x128xf32>
    %cst_101 = arith.constant 5.000000e-01 : f32
    %414 = vector.broadcast %cst_101 : f32 to vector<8x128xf32>
    %415 = arith.addf %413, %414 : vector<8x128xf32>
    %416 = arith.select %23, %411, %415 : vector<8x128xi1>, vector<8x128xf32>
    %417 = vector.extract_strided_slice %416 {offsets = [0, 0], sizes = [8, 32], strides = [1, 1]} : vector<8x128xf32> to vector<8x32xf32>
    %418 = vector.extract_strided_slice %416 {offsets = [0, 32], sizes = [8, 32], strides = [1, 1]} : vector<8x128xf32> to vector<8x32xf32>
    %419 = vector.extract_strided_slice %416 {offsets = [0, 64], sizes = [8, 32], strides = [1, 1]} : vector<8x128xf32> to vector<8x32xf32>
    %420 = vector.extract_strided_slice %416 {offsets = [0, 96], sizes = [8, 32], strides = [1, 1]} : vector<8x128xf32> to vector<8x32xf32>
    %421 = arith.mulf %418, %357 : vector<8x32xf32>
    %422 = arith.mulf %417, %419 : vector<8x32xf32>
    %423 = arith.addf %421, %422 : vector<8x32xf32>
    %424 = math.tanh %423 : vector<8x32xf32>
    %425 = arith.mulf %420, %424 : vector<8x32xf32>
    %c56 = arith.constant 56 : index
    %c0_102 = arith.constant 0 : index
    %426 = vector.load %arg4[%c56, %c0_102] : memref<64x128xf32, #tpu.memory_space<vmem>>, vector<8x128xf32>
    %427 = arith.truncf %381 : vector<8x32xf32> to vector<8x32xbf16>
    %cst_103 = arith.constant dense<0.000000e+00> : vector<8x128xf32>
    %428 = tpu.matmul %427, %1, %cst_103 {dimension_numbers = #tpu.dot_dimension_numbers<[1], [0], [0], [1], [0, 0, 1, 1], [], []>} : vector<8x32xbf16>, vector<32x128xbf16>, vector<8x128xf32> -> vector<8x128xf32>
    %429 = arith.addf %426, %428 : vector<8x128xf32>
    %cst_104 = arith.constant 5.000000e-01 : f32
    %430 = vector.broadcast %cst_104 : f32 to vector<8x128xf32>
    %431 = arith.mulf %430, %429 : vector<8x128xf32>
    %432 = arith.select %23, %429, %431 : vector<8x128xi1>, vector<8x128xf32>
    %433 = math.tanh %432 : vector<8x128xf32>
    %cst_105 = arith.constant 5.000000e-01 : f32
    %434 = vector.broadcast %cst_105 : f32 to vector<8x128xf32>
    %435 = arith.mulf %434, %433 : vector<8x128xf32>
    %cst_106 = arith.constant 5.000000e-01 : f32
    %436 = vector.broadcast %cst_106 : f32 to vector<8x128xf32>
    %437 = arith.addf %435, %436 : vector<8x128xf32>
    %438 = arith.select %23, %433, %437 : vector<8x128xi1>, vector<8x128xf32>
    %439 = vector.extract_strided_slice %438 {offsets = [0, 0], sizes = [8, 32], strides = [1, 1]} : vector<8x128xf32> to vector<8x32xf32>
    %440 = vector.extract_strided_slice %438 {offsets = [0, 32], sizes = [8, 32], strides = [1, 1]} : vector<8x128xf32> to vector<8x32xf32>
    %441 = vector.extract_strided_slice %438 {offsets = [0, 64], sizes = [8, 32], strides = [1, 1]} : vector<8x128xf32> to vector<8x32xf32>
    %442 = vector.extract_strided_slice %438 {offsets = [0, 96], sizes = [8, 32], strides = [1, 1]} : vector<8x128xf32> to vector<8x32xf32>
    %443 = arith.mulf %440, %379 : vector<8x32xf32>
    %444 = arith.mulf %439, %441 : vector<8x32xf32>
    %445 = arith.addf %443, %444 : vector<8x32xf32>
    %446 = math.tanh %445 : vector<8x32xf32>
    %447 = arith.mulf %442, %446 : vector<8x32xf32>
    %448 = tpu.concatenate %381, %403 in 1 : vector<8x32xf32>, vector<8x32xf32> -> vector<8x64xf32>
    %449 = arith.truncf %448 : vector<8x64xf32> to vector<8x64xbf16>
    %cst_107 = arith.constant dense<0.000000e+00> : vector<8x128xf32>
    %450 = tpu.matmul %449, %2, %cst_107 {dimension_numbers = #tpu.dot_dimension_numbers<[1], [0], [0], [1], [0, 0, 1, 1], [], []>} : vector<8x64xbf16>, vector<64x128xbf16>, vector<8x128xf32> -> vector<8x128xf32>
    %451 = arith.addf %450, %8 : vector<8x128xf32>
    %cst_108 = arith.constant 5.000000e-01 : f32
    %452 = vector.broadcast %cst_108 : f32 to vector<8x128xf32>
    %453 = arith.mulf %452, %451 : vector<8x128xf32>
    %454 = arith.select %23, %451, %453 : vector<8x128xi1>, vector<8x128xf32>
    %455 = math.tanh %454 : vector<8x128xf32>
    %cst_109 = arith.constant 5.000000e-01 : f32
    %456 = vector.broadcast %cst_109 : f32 to vector<8x128xf32>
    %457 = arith.mulf %456, %455 : vector<8x128xf32>
    %cst_110 = arith.constant 5.000000e-01 : f32
    %458 = vector.broadcast %cst_110 : f32 to vector<8x128xf32>
    %459 = arith.addf %457, %458 : vector<8x128xf32>
    %460 = arith.select %23, %455, %459 : vector<8x128xi1>, vector<8x128xf32>
    %461 = vector.extract_strided_slice %460 {offsets = [0, 0], sizes = [8, 32], strides = [1, 1]} : vector<8x128xf32> to vector<8x32xf32>
    %462 = vector.extract_strided_slice %460 {offsets = [0, 32], sizes = [8, 32], strides = [1, 1]} : vector<8x128xf32> to vector<8x32xf32>
    %463 = vector.extract_strided_slice %460 {offsets = [0, 64], sizes = [8, 32], strides = [1, 1]} : vector<8x128xf32> to vector<8x32xf32>
    %464 = vector.extract_strided_slice %460 {offsets = [0, 96], sizes = [8, 32], strides = [1, 1]} : vector<8x128xf32> to vector<8x32xf32>
    %465 = arith.mulf %462, %401 : vector<8x32xf32>
    %466 = arith.mulf %461, %463 : vector<8x32xf32>
    %467 = arith.addf %465, %466 : vector<8x32xf32>
    %468 = math.tanh %467 : vector<8x32xf32>
    %469 = arith.mulf %464, %468 : vector<8x32xf32>
    %470 = tpu.concatenate %403, %425 in 1 : vector<8x32xf32>, vector<8x32xf32> -> vector<8x64xf32>
    %471 = arith.truncf %470 : vector<8x64xf32> to vector<8x64xbf16>
    %cst_111 = arith.constant dense<0.000000e+00> : vector<8x128xf32>
    %472 = tpu.matmul %471, %3, %cst_111 {dimension_numbers = #tpu.dot_dimension_numbers<[1], [0], [0], [1], [0, 0, 1, 1], [], []>} : vector<8x64xbf16>, vector<64x128xbf16>, vector<8x128xf32> -> vector<8x128xf32>
    %473 = arith.addf %472, %11 : vector<8x128xf32>
    %cst_112 = arith.constant 5.000000e-01 : f32
    %474 = vector.broadcast %cst_112 : f32 to vector<8x128xf32>
    %475 = arith.mulf %474, %473 : vector<8x128xf32>
    %476 = arith.select %23, %473, %475 : vector<8x128xi1>, vector<8x128xf32>
    %477 = math.tanh %476 : vector<8x128xf32>
    %cst_113 = arith.constant 5.000000e-01 : f32
    %478 = vector.broadcast %cst_113 : f32 to vector<8x128xf32>
    %479 = arith.mulf %478, %477 : vector<8x128xf32>
    %cst_114 = arith.constant 5.000000e-01 : f32
    %480 = vector.broadcast %cst_114 : f32 to vector<8x128xf32>
    %481 = arith.addf %479, %480 : vector<8x128xf32>
    %482 = arith.select %23, %477, %481 : vector<8x128xi1>, vector<8x128xf32>
    %483 = vector.extract_strided_slice %482 {offsets = [0, 0], sizes = [8, 32], strides = [1, 1]} : vector<8x128xf32> to vector<8x32xf32>
    %484 = vector.extract_strided_slice %482 {offsets = [0, 32], sizes = [8, 32], strides = [1, 1]} : vector<8x128xf32> to vector<8x32xf32>
    %485 = vector.extract_strided_slice %482 {offsets = [0, 64], sizes = [8, 32], strides = [1, 1]} : vector<8x128xf32> to vector<8x32xf32>
    %486 = vector.extract_strided_slice %482 {offsets = [0, 96], sizes = [8, 32], strides = [1, 1]} : vector<8x128xf32> to vector<8x32xf32>
    %487 = arith.mulf %484, %423 : vector<8x32xf32>
    %488 = arith.mulf %483, %485 : vector<8x32xf32>
    %489 = arith.addf %487, %488 : vector<8x32xf32>
    %490 = math.tanh %489 : vector<8x32xf32>
    %491 = arith.mulf %486, %490 : vector<8x32xf32>
    %492 = tpu.concatenate %447, %469 in 1 : vector<8x32xf32>, vector<8x32xf32> -> vector<8x64xf32>
    %493 = arith.truncf %492 : vector<8x64xf32> to vector<8x64xbf16>
    %cst_115 = arith.constant dense<0.000000e+00> : vector<8x128xf32>
    %494 = tpu.matmul %493, %2, %cst_115 {dimension_numbers = #tpu.dot_dimension_numbers<[1], [0], [0], [1], [0, 0, 1, 1], [], []>} : vector<8x64xbf16>, vector<64x128xbf16>, vector<8x128xf32> -> vector<8x128xf32>
    %495 = arith.addf %494, %8 : vector<8x128xf32>
    %cst_116 = arith.constant 5.000000e-01 : f32
    %496 = vector.broadcast %cst_116 : f32 to vector<8x128xf32>
    %497 = arith.mulf %496, %495 : vector<8x128xf32>
    %498 = arith.select %23, %495, %497 : vector<8x128xi1>, vector<8x128xf32>
    %499 = math.tanh %498 : vector<8x128xf32>
    %cst_117 = arith.constant 5.000000e-01 : f32
    %500 = vector.broadcast %cst_117 : f32 to vector<8x128xf32>
    %501 = arith.mulf %500, %499 : vector<8x128xf32>
    %cst_118 = arith.constant 5.000000e-01 : f32
    %502 = vector.broadcast %cst_118 : f32 to vector<8x128xf32>
    %503 = arith.addf %501, %502 : vector<8x128xf32>
    %504 = arith.select %23, %499, %503 : vector<8x128xi1>, vector<8x128xf32>
    %505 = vector.extract_strided_slice %504 {offsets = [0, 0], sizes = [8, 32], strides = [1, 1]} : vector<8x128xf32> to vector<8x32xf32>
    %506 = vector.extract_strided_slice %504 {offsets = [0, 32], sizes = [8, 32], strides = [1, 1]} : vector<8x128xf32> to vector<8x32xf32>
    %507 = vector.extract_strided_slice %504 {offsets = [0, 64], sizes = [8, 32], strides = [1, 1]} : vector<8x128xf32> to vector<8x32xf32>
    %508 = vector.extract_strided_slice %504 {offsets = [0, 96], sizes = [8, 32], strides = [1, 1]} : vector<8x128xf32> to vector<8x32xf32>
    %509 = arith.mulf %506, %467 : vector<8x32xf32>
    %510 = arith.mulf %505, %507 : vector<8x32xf32>
    %511 = arith.addf %509, %510 : vector<8x32xf32>
    %512 = math.tanh %511 : vector<8x32xf32>
    %513 = arith.mulf %508, %512 : vector<8x32xf32>
    %514 = tpu.concatenate %469, %491 in 1 : vector<8x32xf32>, vector<8x32xf32> -> vector<8x64xf32>
    %515 = arith.truncf %514 : vector<8x64xf32> to vector<8x64xbf16>
    %cst_119 = arith.constant dense<0.000000e+00> : vector<8x128xf32>
    %516 = tpu.matmul %515, %3, %cst_119 {dimension_numbers = #tpu.dot_dimension_numbers<[1], [0], [0], [1], [0, 0, 1, 1], [], []>} : vector<8x64xbf16>, vector<64x128xbf16>, vector<8x128xf32> -> vector<8x128xf32>
    %517 = arith.addf %516, %11 : vector<8x128xf32>
    %cst_120 = arith.constant 5.000000e-01 : f32
    %518 = vector.broadcast %cst_120 : f32 to vector<8x128xf32>
    %519 = arith.mulf %518, %517 : vector<8x128xf32>
    %520 = arith.select %23, %517, %519 : vector<8x128xi1>, vector<8x128xf32>
    %521 = math.tanh %520 : vector<8x128xf32>
    %cst_121 = arith.constant 5.000000e-01 : f32
    %522 = vector.broadcast %cst_121 : f32 to vector<8x128xf32>
    %523 = arith.mulf %522, %521 : vector<8x128xf32>
    %cst_122 = arith.constant 5.000000e-01 : f32
    %524 = vector.broadcast %cst_122 : f32 to vector<8x128xf32>
    %525 = arith.addf %523, %524 : vector<8x128xf32>
    %526 = arith.select %23, %521, %525 : vector<8x128xi1>, vector<8x128xf32>
    %527 = vector.extract_strided_slice %526 {offsets = [0, 0], sizes = [8, 32], strides = [1, 1]} : vector<8x128xf32> to vector<8x32xf32>
    %528 = vector.extract_strided_slice %526 {offsets = [0, 32], sizes = [8, 32], strides = [1, 1]} : vector<8x128xf32> to vector<8x32xf32>
    %529 = vector.extract_strided_slice %526 {offsets = [0, 64], sizes = [8, 32], strides = [1, 1]} : vector<8x128xf32> to vector<8x32xf32>
    %530 = vector.extract_strided_slice %526 {offsets = [0, 96], sizes = [8, 32], strides = [1, 1]} : vector<8x128xf32> to vector<8x32xf32>
    %531 = arith.mulf %528, %489 : vector<8x32xf32>
    %532 = arith.mulf %527, %529 : vector<8x32xf32>
    %533 = arith.addf %531, %532 : vector<8x32xf32>
    %534 = math.tanh %533 : vector<8x32xf32>
    %535 = arith.mulf %530, %534 : vector<8x32xf32>
    %536 = tpu.concatenate %513, %535 in 1 : vector<8x32xf32>, vector<8x32xf32> -> vector<8x64xf32>
    %537 = arith.truncf %536 : vector<8x64xf32> to vector<8x64xbf16>
    %cst_123 = arith.constant dense<0.000000e+00> : vector<8x128xf32>
    %538 = tpu.matmul %537, %3, %cst_123 {dimension_numbers = #tpu.dot_dimension_numbers<[1], [0], [0], [1], [0, 0, 1, 1], [], []>} : vector<8x64xbf16>, vector<64x128xbf16>, vector<8x128xf32> -> vector<8x128xf32>
    %539 = arith.addf %538, %11 : vector<8x128xf32>
    %cst_124 = arith.constant 5.000000e-01 : f32
    %540 = vector.broadcast %cst_124 : f32 to vector<8x128xf32>
    %541 = arith.mulf %540, %539 : vector<8x128xf32>
    %542 = arith.select %23, %539, %541 : vector<8x128xi1>, vector<8x128xf32>
    %543 = math.tanh %542 : vector<8x128xf32>
    %cst_125 = arith.constant 5.000000e-01 : f32
    %544 = vector.broadcast %cst_125 : f32 to vector<8x128xf32>
    %545 = arith.mulf %544, %543 : vector<8x128xf32>
    %cst_126 = arith.constant 5.000000e-01 : f32
    %546 = vector.broadcast %cst_126 : f32 to vector<8x128xf32>
    %547 = arith.addf %545, %546 : vector<8x128xf32>
    %548 = arith.select %23, %543, %547 : vector<8x128xi1>, vector<8x128xf32>
    %549 = vector.extract_strided_slice %548 {offsets = [0, 0], sizes = [8, 32], strides = [1, 1]} : vector<8x128xf32> to vector<8x32xf32>
    %550 = vector.extract_strided_slice %548 {offsets = [0, 32], sizes = [8, 32], strides = [1, 1]} : vector<8x128xf32> to vector<8x32xf32>
    %551 = vector.extract_strided_slice %548 {offsets = [0, 64], sizes = [8, 32], strides = [1, 1]} : vector<8x128xf32> to vector<8x32xf32>
    %552 = vector.extract_strided_slice %548 {offsets = [0, 96], sizes = [8, 32], strides = [1, 1]} : vector<8x128xf32> to vector<8x32xf32>
    %553 = arith.mulf %550, %533 : vector<8x32xf32>
    %554 = arith.mulf %549, %551 : vector<8x32xf32>
    %555 = arith.addf %553, %554 : vector<8x32xf32>
    %556 = math.tanh %555 : vector<8x32xf32>
    %557 = arith.mulf %552, %556 : vector<8x32xf32>
    %558 = arith.truncf %557 : vector<8x32xf32> to vector<8x32xbf16>
    %cst_127 = arith.constant dense<0.000000e+00> : vector<8x128xf32>
    %559 = tpu.matmul %558, %4, %cst_127 {dimension_numbers = #tpu.dot_dimension_numbers<[1], [0], [0], [1], [0, 0, 1, 1], [], []>} : vector<8x32xbf16>, vector<32x128xbf16>, vector<8x128xf32> -> vector<8x128xf32>
    %560 = vector.broadcast %12 : vector<1x128xf32> to vector<8x128xf32>
    %561 = arith.addf %559, %560 : vector<8x128xf32>
    %c0_128 = arith.constant 0 : index
    %c0_129 = arith.constant 0 : index
    %562 = vector.load %arg3[%c0_128, %c0_129] : memref<8x128xf32, #tpu.memory_space<vmem>>, vector<8x128xf32>
    tpu.vector_store %arg3[%c0_128, %c0_129], %561 {strides = array<i32>} : memref<8x128xf32, #tpu.memory_space<vmem>>, vector<8x128xf32>,
    return
  }
}

</mosaic_0001>

<llo_original>
// kernel: neural_network_forward.1
$region0: #{neural_network_forward.1}
  #allocation0 [shape = 'u32[]', space=smem, size = 0x4, offset = 0x4, fixed_abs, tag = 'smem constant byte address 0x4 - core index']
  #allocation1 [shape = 'u32[72,128]{1,0:T(1,128)}', space=vmem, size = 0x9000, scoped, tag = 'internal scratch']
  #allocation2 [shape = 'f32[64,128]{1,0:T(8,128)}', space=vmem, size = 0x8000, scoped, tag = 'scratch operand']
  %s0 = inlined_call_operand.vmem [shape: bf16[64,16], index: 0, kind: input, shape index: {}]
  %s1 = inlined_call_operand.hbm [shape: bf16[208,128], index: 1, kind: input, shape index: {}]
  %s2 = inlined_call_operand.vmem [shape: f32[8,128], index: 2, kind: input, shape index: {}]
  %s3 = inlined_call_operand.vmem [shape: f32[8,128], index: 3, kind: output, shape index: {}]
  %s4 = sld [smem:[#allocation0]]
  $region26: #{neural_network_forward.1} parent=0
    _
  %s6 = ssub.s32 1, %s4
  %s7 = scalar_select 0, %s6, %s4
  $region1: #{neural_network_forward.1} parent=0
    #allocation3 [shape = 'u8[53248]{0}', space=vmem, size = 0xd000, scoped, tag = 'input window, operand 1, single buffered']
    #allocation4 [shape = 's32[1]{0}', space=sflag, size = 0x4, scoped, tag = 'scoped memory for neural_network_forward.1']
    %8 = vsyncpa [#allocation4], 0
    // Predicated region
    $region2: #{neural_network_forward.1} parent=1 // pred_check
      _
    $region3: #{neural_network_forward.1} parent=1 // pred_check_branch
      %10 = sbr.rel (0) target = $region5
    $region4: #{neural_network_forward.1} parent=1 // pred_region
      _
    $region5: #{neural_network_forward.1} parent=1 // pred_fallthru
      _
    // Predicated region
    $region6: #{neural_network_forward.1} parent=1 // pred_check
      _
    $region7: #{neural_network_forward.1} parent=1 // pred_check_branch
      %12 = sbr.rel (0) target = $region9
    $region8: #{neural_network_forward.1} parent=1 // pred_region
      %14 = vsyncadd [#allocation4], 0
      %s15 = sshll.u32 %s1, 4
      %s16 = int_to_ptr.hbm [resolvable:$true] %s15
      %s17 = sshll.u32 [#allocation3], 4
      %s18 = int_to_ptr.vmem [resolvable:$true] %s17
      %23 = dma.hbm_to_vmem [thread:$0]  %s16, 1664, %s18, [#allocation4], 64, 64, 4
    $region9: #{neural_network_forward.1} parent=1 // pred_fallthru
      _
    // Predicated region
    $region10: #{neural_network_forward.1} parent=1 // pred_check
      _
    $region11: #{neural_network_forward.1} parent=1 // pred_check_branch
      %25 = sbr.rel (0) target = $region13
    $region12: #{neural_network_forward.1} parent=1 // pred_region
      _
    $region13: #{neural_network_forward.1} parent=1 // pred_fallthru
      _
    // Predicated region
    $region14: #{neural_network_forward.1} parent=1 // pred_check
      _
    $region15: #{neural_network_forward.1} parent=1 // pred_check_branch
      %27 = sbr.rel (0) target = $region17
    $region16: #{neural_network_forward.1} parent=1 // pred_region
      %29 = dma.done [#allocation4], 1664
    $region17: #{neural_network_forward.1} parent=1 // pred_fallthru
      _
    %v31 = vld [vmem:[#allocation3] sm:$0xf]
    %v32 = vld [vmem:[#allocation3 + $0x4] sm:$0xf]
    %v33 = vld [vmem:[#allocation3 + $0x8] sm:$0xf]
    %v34 = vld [vmem:[#allocation3 + $0xc] sm:$0xf]
    %v35 = vld [vmem:[#allocation3 + $0x10] sm:$0xf]
    %v36 = vld [vmem:[#allocation3 + $0x14] sm:$0xf]
    %v37 = vld [vmem:[#allocation3 + $0x18] sm:$0xf]
    %v38 = vld [vmem:[#allocation3 + $0x1c] sm:$0xf]
    %v39 = vld [vmem:[#allocation3 + $0x20] sm:$0xf]
    %v40 = vld [vmem:[#allocation3 + $0x24] sm:$0xf]
    %v41 = vld [vmem:[#allocation3 + $0x28] sm:$0xf]
    %v42 = vld [vmem:[#allocation3 + $0x2c] sm:$0xf]
    %v43 = vld [vmem:[#allocation3 + $0x30] sm:$0xf]
    %v44 = vld [vmem:[#allocation3 + $0x34] sm:$0xf]
    %v45 = vld [vmem:[#allocation3 + $0x38] sm:$0xf]
    %v46 = vld [vmem:[#allocation3 + $0x3c] sm:$0xf]
    %v47 = vld [vmem:[#allocation3 + $0x40] sm:$0xf]
    %v48 = vld [vmem:[#allocation3 + $0x44] sm:$0xf]
    %v49 = vld [vmem:[#allocation3 + $0x48] sm:$0xf]
    %v50 = vld [vmem:[#allocation3 + $0x4c] sm:$0xf]
    %v51 = vld [vmem:[#allocation3 + $0x50] sm:$0xf]
    %v52 = vld [vmem:[#allocation3 + $0x54] sm:$0xf]
    %v53 = vld [vmem:[#allocation3 + $0x58] sm:$0xf]
    %v54 = vld [vmem:[#allocation3 + $0x5c] sm:$0xf]
    %v55 = vld [vmem:[#allocation3 + $0x60] sm:$0xf]
    %v56 = vld [vmem:[#allocation3 + $0x64] sm:$0xf]
    %v57 = vld [vmem:[%s2] sm:$0x1]
    %v58 = vld [vmem:[%s2 + $0x1] sm:$0x1]
    %v59 = vperm.slane %v58, 0
    %v60 = vld [vmem:[%s2 + $0x2] sm:$0x1]
    %v61 = vperm.slane %v60, 0
    %v62 = vld [vmem:[%s2 + $0x3] sm:$0x1]
    %v63 = vld [vmem:[%s0] sm:$0xf]
    %v64 = vld [vmem:[%s0 + $0x4] sm:$0xf]
    %v65 = vld [vmem:[%s0 + $0x8] sm:$0xf]
    %v66 = vld [vmem:[%s0 + $0xc] sm:$0xf]
    %v67 = vld [vmem:[%s0 + $0x10] sm:$0xf]
    %v68 = vld [vmem:[%s0 + $0x14] sm:$0xf]
    %v69 = vld [vmem:[%s0 + $0x18] sm:$0xf]
    %v70 = vld [vmem:[%s0 + $0x1c] sm:$0xf]
    %v71 = vperm.slane %v57, 0
    %v80 = vunpack.c.l.b16 %v63
    %v81 = vunpack.c.l.b16 %v64
    %v82 = vunpack.c.l.b16 %v65
    %v83 = vunpack.c.l.b16 %v66
    %v84 = vunpack.c.l.b16 %v67
    %v85 = vunpack.c.l.b16 %v68
    %v86 = vunpack.c.l.b16 %v69
    %v87 = vunpack.c.l.b16 %v70
    %v88 = vpack.c.b16 %v81, %v80
    %v89 = vpack.c.b16 %v83, %v82
    %v90 = vpack.c.b16 %v85, %v84
    %v91 = vpack.c.b16 %v87, %v86
    %v94 = vunpack.c.l.b16 %v31
    %v95 = vunpack.c.l.b16 %v32
    %v96 = vpack.c.b16 %v95, %v94
    %vm98 = vcmask 130048
    %v100 = vsel %vm98, %v88, 0
    %v103 = vsel %vm98, %v89, 0
    %v106 = vsel %vm98, %v90, 0
    %v109 = vsel %vm98, %v91, 0
    %111 = vmatpush.bf16.msra.mxu0 0
    %112 = vmatpush.bf16.msra.mxu0 0
    %113 = vmatpush.bf16.msra.mxu0 0
    %114 = vmatpush.bf16.msra.mxu0 0
    %115 = vmatpush.bf16.msra.mxu0 0
    %116 = vmatpush.bf16.msra.mxu0 0
    %117 = vmatpush.bf16.msra.mxu0 0
    %118 = vmatpush.bf16.msra.mxu0 %v96
    %119 = vmatmul.bf16.gmra.mxu0 %v100
    %v120 = vpop.f32.mrf.mxu0
    %v121 = vadd.f32 %v71, %v120
    %v122 = vpop.f32.mrf.mxu0
    %v123 = vadd.f32 %v71, %v122
    %124 = vmatmul.bf16.gmra.mxu0 %v103
    %v125 = vpop.f32.mrf.mxu0
    %v126 = vadd.f32 %v71, %v125
    %v127 = vpop.f32.mrf.mxu0
    %v128 = vadd.f32 %v71, %v127
    %129 = vmatmul.bf16.gmra.mxu0 %v106
    %v130 = vpop.f32.mrf.mxu0
    %v131 = vadd.f32 %v71, %v130
    %v132 = vpop.f32.mrf.mxu0
    %v133 = vadd.f32 %v71, %v132
    %134 = vmatmul.bf16.gmra.mxu0 %v109
    %v135 = vpop.f32.mrf.mxu0
    %v136 = vadd.f32 %v71, %v135
    %v137 = vpop.f32.mrf.mxu0
    %v138 = vadd.f32 %v71, %v137
    %139 = vdwg.mxu0
    %140 = vst [vmem:[#allocation2] sm:$0xff] %v121
    %141 = vst [vmem:[#allocation2 + $0x8] sm:$0xff] %v123
    %142 = vst [vmem:[#allocation2 + $0x10] sm:$0xff] %v126
    %143 = vst [vmem:[#allocation2 + $0x18] sm:$0xff] %v128
    %144 = vst [vmem:[#allocation2 + $0x20] sm:$0xff] %v131
    %145 = vst [vmem:[#allocation2 + $0x28] sm:$0xff] %v133
    %146 = vst [vmem:[#allocation2 + $0x30] sm:$0xff] %v136
    %147 = vst [vmem:[#allocation2 + $0x38] sm:$0xff] %v138
    %v148 = vlaneseq
    %v149 = vand.u32 %v148, 127
    %vm150 = vcmp.ge.s32.totalorder %v149, 64
    %vm151 = vcmp.lt.s32.totalorder %v149, 96
    %vm152 = vmand %vm150, %vm151
    %v153 = vld [vmem:[#allocation2] sm:$0xff]
    %v158 = vunpack.c.l.b16 %v33
    %v159 = vunpack.c.l.b16 %v34
    %v160 = vunpack.c.l.b16 %v35
    %v161 = vunpack.c.l.b16 %v36
    %v162 = vpack.c.b16 %v159, %v158
    %v163 = vpack.c.b16 %v161, %v160
    %vm166 = vcmask 261120
    %v168 = vsel %vm166, 0, 0
    %170 = vmatpush.bf16.msra.mxu0 0
    %171 = vmatpush.bf16.msra.mxu0 0
    %172 = vmatpush.bf16.msra.mxu0 0
    %173 = vmatpush.bf16.msra.mxu0 0
    %174 = vmatpush.bf16.msra.mxu0 0
    %175 = vmatpush.bf16.msra.mxu0 0
    %176 = vmatpush.bf16.msra.mxu0 %v163
    %177 = vmatpush.bf16.msra.mxu0 %v162
    %178 = vmatmul.bf16.gmra.mxu0 %v168
    %v179 = vpop.f32.mrf.mxu0
    %v180 = vadd.f32 0.0, %v179
    %v181 = vpop.f32.mrf.mxu0
    %182 = vdwg.mxu0
    %v183 = vadd.f32 %v153, %v180
    %v184 = vmul.f32 %v183, 0.5
    %v185 = vsel %vm152, %v183, %v184
    %v186 = vtanh.pop %v185
    %v187 = vmul.f32 %v186, 0.5
    %v188 = vadd.f32 %v187, 0.5
    %v189 = vsel %vm152, %v186, %v188
    %v190 = vmul.f32 %v189, 0.0
    %192 = vrot.lane.b32.xlu0 %v189, 64
    %v193 = vpop.permute.xlu0 %192
    %v195 = vmul.f32 %v189, %v193
    %197 = vrot.lane.b32.xlu0 %v195, 32
    %v198 = vpop.permute.xlu0 %197
    %v200 = vadd.f32 %v190, %v198
    %v201 = vtanh.pop %v200
    %203 = vrot.lane.b32.xlu0 %v201, 64
    %v204 = vpop.permute.xlu0 %203
    %v206 = vmul.f32 %v189, %v204
    %v207 = vld [vmem:[#allocation2 + $0x8] sm:$0xff]
    %v208 = vpack.c.bf16 %v206, %v206
    %210 = vrot.lane.b32.xlu0 %v208, 32
    %v211 = vpop.permute.xlu0 %210
    %v213 = vsel %vm166, %v211, 0
    %215 = vmatpush.bf16.msra.mxu0 0
    %216 = vmatpush.bf16.msra.mxu0 0
    %217 = vmatpush.bf16.msra.mxu0 0
    %218 = vmatpush.bf16.msra.mxu0 0
    %219 = vmatpush.bf16.msra.mxu0 0
    %220 = vmatpush.bf16.msra.mxu0 0
    %221 = vmatpush.bf16.msra.mxu0 %v163
    %222 = vmatpush.bf16.msra.mxu0 %v162
    %223 = vmatmul.bf16.gmra.mxu0 %v213
    %v224 = vpop.f32.mrf.mxu0
    %v225 = vadd.f32 0.0, %v224
    %v226 = vpop.f32.mrf.mxu0
    %227 = vdwg.mxu0
    %v228 = vadd.f32 %v207, %v225
    %v229 = vmul.f32 %v228, 0.5
    %v230 = vsel %vm152, %v228, %v229
    %v231 = vtanh.pop %v230
    %v232 = vmul.f32 %v231, 0.5
    %v233 = vadd.f32 %v232, 0.5
    %v234 = vsel %vm152, %v231, %v233
    %v235 = vmul.f32 %v234, %v200
    %237 = vrot.lane.b32.xlu0 %v234, 64
    %v238 = vpop.permute.xlu0 %237
    %v240 = vmul.f32 %v234, %v238
    %242 = vrot.lane.b32.xlu0 %v240, 32
    %v243 = vpop.permute.xlu0 %242
    %v245 = vadd.f32 %v235, %v243
    %v246 = vtanh.pop %v245
    %248 = vrot.lane.b32.xlu0 %v246, 64
    %v249 = vpop.permute.xlu0 %248
    %v251 = vmul.f32 %v234, %v249
    %253 = vrot.lane.b32.xlu0 %v206, 32
    %v254 = vpop.permute.xlu0 %253
    %v256 = vsel %vm166, %v254, 0.0
    %v257 = vpack.c.bf16 %v256, %v256
    %v266 = vunpack.c.l.b16 %v37
    %v267 = vunpack.c.l.b16 %v38
    %v268 = vunpack.c.l.b16 %v39
    %v269 = vunpack.c.l.b16 %v40
    %v270 = vunpack.c.l.b16 %v41
    %v271 = vunpack.c.l.b16 %v42
    %v272 = vunpack.c.l.b16 %v43
    %v273 = vunpack.c.l.b16 %v44
    %v274 = vpack.c.b16 %v267, %v266
    %v275 = vpack.c.b16 %v269, %v268
    %v276 = vpack.c.b16 %v271, %v270
    %v277 = vpack.c.b16 %v273, %v272
    %vm282 = vcmask 523264
    %v284 = vsel %vm282, %v257, 0
    %286 = vmatpush.bf16.msra.mxu0 0
    %287 = vmatpush.bf16.msra.mxu0 0
    %288 = vmatpush.bf16.msra.mxu0 0
    %289 = vmatpush.bf16.msra.mxu0 0
    %290 = vmatpush.bf16.msra.mxu0 %v277
    %291 = vmatpush.bf16.msra.mxu0 %v276
    %292 = vmatpush.bf16.msra.mxu0 %v275
    %293 = vmatpush.bf16.msra.mxu0 %v274
    %294 = vmatmul.bf16.gmra.mxu0 %v284
    %v295 = vpop.f32.mrf.mxu0
    %v296 = vadd.f32 %v59, %v295
    %v297 = vpop.f32.mrf.mxu0
    %298 = vdwg.mxu0
    %v299 = vmul.f32 %v296, 0.5
    %v300 = vsel %vm152, %v296, %v299
    %v301 = vtanh.pop %v300
    %v302 = vmul.f32 %v301, 0.5
    %v303 = vadd.f32 %v302, 0.5
    %v304 = vsel %vm152, %v301, %v303
    %v305 = vmul.f32 %v304, 0.0
    %307 = vrot.lane.b32.xlu0 %v304, 64
    %v308 = vpop.permute.xlu0 %307
    %v310 = vmul.f32 %v304, %v308
    %312 = vrot.lane.b32.xlu0 %v310, 32
    %v313 = vpop.permute.xlu0 %312
    %v315 = vadd.f32 %v305, %v313
    %v316 = vtanh.pop %v315
    %318 = vrot.lane.b32.xlu0 %v316, 64
    %v319 = vpop.permute.xlu0 %318
    %v321 = vmul.f32 %v304, %v319
    %v322 = vld [vmem:[#allocation2 + $0x10] sm:$0xff]
    %v323 = vpack.c.bf16 %v251, %v251
    %325 = vrot.lane.b32.xlu0 %v323, 32
    %v326 = vpop.permute.xlu0 %325
    %v328 = vsel %vm166, %v326, 0
    %330 = vmatpush.bf16.msra.mxu0 0
    %331 = vmatpush.bf16.msra.mxu0 0
    %332 = vmatpush.bf16.msra.mxu0 0
    %333 = vmatpush.bf16.msra.mxu0 0
    %334 = vmatpush.bf16.msra.mxu0 0
    %335 = vmatpush.bf16.msra.mxu0 0
    %336 = vmatpush.bf16.msra.mxu0 %v163
    %337 = vmatpush.bf16.msra.mxu0 %v162
    %338 = vmatmul.bf16.gmra.mxu0 %v328
    %v339 = vpop.f32.mrf.mxu0
    %v340 = vadd.f32 0.0, %v339
    %v341 = vpop.f32.mrf.mxu0
    %342 = vdwg.mxu0
    %v343 = vadd.f32 %v322, %v340
    %v344 = vmul.f32 %v343, 0.5
    %v345 = vsel %vm152, %v343, %v344
    %v346 = vtanh.pop %v345
    %v347 = vmul.f32 %v346, 0.5
    %v348 = vadd.f32 %v347, 0.5
    %v349 = vsel %vm152, %v346, %v348
    %v350 = vmul.f32 %v349, %v245
    %352 = vrot.lane.b32.xlu0 %v349, 64
    %v353 = vpop.permute.xlu0 %352
    %v355 = vmul.f32 %v349, %v353
    %357 = vrot.lane.b32.xlu0 %v355, 32
    %v358 = vpop.permute.xlu0 %357
    %v360 = vadd.f32 %v350, %v358
    %v361 = vtanh.pop %v360
    %363 = vrot.lane.b32.xlu0 %v361, 64
    %v364 = vpop.permute.xlu0 %363
    %v366 = vmul.f32 %v349, %v364
    %368 = vrot.lane.b32.xlu0 %v251, 32
    %v369 = vpop.permute.xlu0 %368
    %372 = vrot.lane.b32.xlu0 %v321, 64
    %v373 = vpop.permute.xlu0 %372
    %v375 = vsel %vm166, %v369, %v373
    %v376 = vpack.c.bf16 %v375, %v375
    %v378 = vsel %vm282, %v376, 0
    %380 = vmatpush.bf16.msra.mxu0 0
    %381 = vmatpush.bf16.msra.mxu0 0
    %382 = vmatpush.bf16.msra.mxu0 0
    %383 = vmatpush.bf16.msra.mxu0 0
    %384 = vmatpush.bf16.msra.mxu0 %v277
    %385 = vmatpush.bf16.msra.mxu0 %v276
    %386 = vmatpush.bf16.msra.mxu0 %v275
    %387 = vmatpush.bf16.msra.mxu0 %v274
    %388 = vmatmul.bf16.gmra.mxu0 %v378
    %v389 = vpop.f32.mrf.mxu0
    %v390 = vadd.f32 %v59, %v389
    %v391 = vpop.f32.mrf.mxu0
    %392 = vdwg.mxu0
    %v393 = vmul.f32 %v390, 0.5
    %v394 = vsel %vm152, %v390, %v393
    %v395 = vtanh.pop %v394
    %v396 = vmul.f32 %v395, 0.5
    %v397 = vadd.f32 %v396, 0.5
    %v398 = vsel %vm152, %v395, %v397
    %v399 = vmul.f32 %v398, %v315
    %401 = vrot.lane.b32.xlu0 %v398, 64
    %v402 = vpop.permute.xlu0 %401
    %v404 = vmul.f32 %v398, %v402
    %406 = vrot.lane.b32.xlu0 %v404, 32
    %v407 = vpop.permute.xlu0 %406
    %v409 = vadd.f32 %v399, %v407
    %v410 = vtanh.pop %v409
    %412 = vrot.lane.b32.xlu0 %v410, 64
    %v413 = vpop.permute.xlu0 %412
    %v415 = vmul.f32 %v398, %v413
    %416 = vrot.lane.b32.xlu0 %v321, 32
    %v417 = vpop.permute.xlu0 %416
    %v419 = vsel %vm166, %v417, 0.0
    %v420 = vpack.c.bf16 %v419, %v419
    %v429 = vunpack.c.l.b16 %v45
    %v430 = vunpack.c.l.b16 %v46
    %v431 = vunpack.c.l.b16 %v47
    %v432 = vunpack.c.l.b16 %v48
    %v433 = vunpack.c.l.b16 %v49
    %v434 = vunpack.c.l.b16 %v50
    %v435 = vunpack.c.l.b16 %v51
    %v436 = vunpack.c.l.b16 %v52
    %v437 = vpack.c.b16 %v430, %v429
    %v438 = vpack.c.b16 %v432, %v431
    %v439 = vpack.c.b16 %v434, %v433
    %v440 = vpack.c.b16 %v436, %v435
    %v446 = vsel %vm282, %v420, 0
    %448 = vmatpush.bf16.msra.mxu0 0
    %449 = vmatpush.bf16.msra.mxu0 0
    %450 = vmatpush.bf16.msra.mxu0 0
    %451 = vmatpush.bf16.msra.mxu0 0
    %452 = vmatpush.bf16.msra.mxu0 %v440
    %453 = vmatpush.bf16.msra.mxu0 %v439
    %454 = vmatpush.bf16.msra.mxu0 %v438
    %455 = vmatpush.bf16.msra.mxu0 %v437
    %456 = vmatmul.bf16.gmra.mxu0 %v446
    %v457 = vpop.f32.mrf.mxu0
    %v458 = vadd.f32 %v61, %v457
    %v459 = vpop.f32.mrf.mxu0
    %460 = vdwg.mxu0
    %v461 = vmul.f32 %v458, 0.5
    %v462 = vsel %vm152, %v458, %v461
    %v463 = vtanh.pop %v462
    %v464 = vmul.f32 %v463, 0.5
    %v465 = vadd.f32 %v464, 0.5
    %v466 = vsel %vm152, %v463, %v465
    %v467 = vmul.f32 %v466, 0.0
    %469 = vrot.lane.b32.xlu0 %v466, 64
    %v470 = vpop.permute.xlu0 %469
    %v472 = vmul.f32 %v466, %v470
    %474 = vrot.lane.b32.xlu0 %v472, 32
    %v475 = vpop.permute.xlu0 %474
    %v477 = vadd.f32 %v467, %v475
    %v478 = vtanh.pop %v477
    %480 = vrot.lane.b32.xlu0 %v478, 64
    %v481 = vpop.permute.xlu0 %480
    %v483 = vmul.f32 %v466, %v481
    %v484 = vld [vmem:[#allocation2 + $0x18] sm:$0xff]
    %v485 = vpack.c.bf16 %v366, %v366
    %487 = vrot.lane.b32.xlu0 %v485, 32
    %v488 = vpop.permute.xlu0 %487
    %v490 = vsel %vm166, %v488, 0
    %492 = vmatpush.bf16.msra.mxu0 0
    %493 = vmatpush.bf16.msra.mxu0 0
    %494 = vmatpush.bf16.msra.mxu0 0
    %495 = vmatpush.bf16.msra.mxu0 0
    %496 = vmatpush.bf16.msra.mxu0 0
    %497 = vmatpush.bf16.msra.mxu0 0
    %498 = vmatpush.bf16.msra.mxu0 %v163
    %499 = vmatpush.bf16.msra.mxu0 %v162
    %500 = vmatmul.bf16.gmra.mxu0 %v490
    %v501 = vpop.f32.mrf.mxu0
    %v502 = vadd.f32 0.0, %v501
    %v503 = vpop.f32.mrf.mxu0
    %504 = vdwg.mxu0
    %v505 = vadd.f32 %v484, %v502
    %v506 = vmul.f32 %v505, 0.5
    %v507 = vsel %vm152, %v505, %v506
    %v508 = vtanh.pop %v507
    %v509 = vmul.f32 %v508, 0.5
    %v510 = vadd.f32 %v509, 0.5
    %v511 = vsel %vm152, %v508, %v510
    %v512 = vmul.f32 %v511, %v360
    %514 = vrot.lane.b32.xlu0 %v511, 64
    %v515 = vpop.permute.xlu0 %514
    %v517 = vmul.f32 %v511, %v515
    %519 = vrot.lane.b32.xlu0 %v517, 32
    %v520 = vpop.permute.xlu0 %519
    %v522 = vadd.f32 %v512, %v520
    %v523 = vtanh.pop %v522
    %525 = vrot.lane.b32.xlu0 %v523, 64
    %v526 = vpop.permute.xlu0 %525
    %v528 = vmul.f32 %v511, %v526
    %530 = vrot.lane.b32.xlu0 %v366, 32
    %v531 = vpop.permute.xlu0 %530
    %534 = vrot.lane.b32.xlu0 %v415, 64
    %v535 = vpop.permute.xlu0 %534
    %v537 = vsel %vm166, %v531, %v535
    %v538 = vpack.c.bf16 %v537, %v537
    %v540 = vsel %vm282, %v538, 0
    %542 = vmatpush.bf16.msra.mxu0 0
    %543 = vmatpush.bf16.msra.mxu0 0
    %544 = vmatpush.bf16.msra.mxu0 0
    %545 = vmatpush.bf16.msra.mxu0 0
    %546 = vmatpush.bf16.msra.mxu0 %v277
    %547 = vmatpush.bf16.msra.mxu0 %v276
    %548 = vmatpush.bf16.msra.mxu0 %v275
    %549 = vmatpush.bf16.msra.mxu0 %v274
    %550 = vmatmul.bf16.gmra.mxu0 %v540
    %v551 = vpop.f32.mrf.mxu0
    %v552 = vadd.f32 %v59, %v551
    %v553 = vpop.f32.mrf.mxu0
    %554 = vdwg.mxu0
    %v555 = vmul.f32 %v552, 0.5
    %v556 = vsel %vm152, %v552, %v555
    %v557 = vtanh.pop %v556
    %v558 = vmul.f32 %v557, 0.5
    %v559 = vadd.f32 %v558, 0.5
    %v560 = vsel %vm152, %v557, %v559
    %v561 = vmul.f32 %v560, %v409
    %563 = vrot.lane.b32.xlu0 %v560, 64
    %v564 = vpop.permute.xlu0 %563
    %v566 = vmul.f32 %v560, %v564
    %568 = vrot.lane.b32.xlu0 %v566, 32
    %v569 = vpop.permute.xlu0 %568
    %v571 = vadd.f32 %v561, %v569
    %v572 = vtanh.pop %v571
    %574 = vrot.lane.b32.xlu0 %v572, 64
    %v575 = vpop.permute.xlu0 %574
    %v577 = vmul.f32 %v560, %v575
    %578 = vrot.lane.b32.xlu0 %v415, 32
    %v579 = vpop.permute.xlu0 %578
    %582 = vrot.lane.b32.xlu0 %v483, 64
    %v583 = vpop.permute.xlu0 %582
    %v585 = vsel %vm166, %v579, %v583
    %v586 = vpack.c.bf16 %v585, %v585
    %v588 = vsel %vm282, %v586, 0
    %590 = vmatpush.bf16.msra.mxu0 0
    %591 = vmatpush.bf16.msra.mxu0 0
    %592 = vmatpush.bf16.msra.mxu0 0
    %593 = vmatpush.bf16.msra.mxu0 0
    %594 = vmatpush.bf16.msra.mxu0 %v440
    %595 = vmatpush.bf16.msra.mxu0 %v439
    %596 = vmatpush.bf16.msra.mxu0 %v438
    %597 = vmatpush.bf16.msra.mxu0 %v437
    %598 = vmatmul.bf16.gmra.mxu0 %v588
    %v599 = vpop.f32.mrf.mxu0
    %v600 = vadd.f32 %v61, %v599
    %v601 = vpop.f32.mrf.mxu0
    %602 = vdwg.mxu0
    %v603 = vmul.f32 %v600, 0.5
    %v604 = vsel %vm152, %v600, %v603
    %v605 = vtanh.pop %v604
    %v606 = vmul.f32 %v605, 0.5
    %v607 = vadd.f32 %v606, 0.5
    %v608 = vsel %vm152, %v605, %v607
    %v609 = vmul.f32 %v608, %v477
    %611 = vrot.lane.b32.xlu0 %v608, 64
    %v612 = vpop.permute.xlu0 %611
    %v614 = vmul.f32 %v608, %v612
    %616 = vrot.lane.b32.xlu0 %v614, 32
    %v617 = vpop.permute.xlu0 %616
    %v619 = vadd.f32 %v609, %v617
    %v620 = vtanh.pop %v619
    %622 = vrot.lane.b32.xlu0 %v620, 64
    %v623 = vpop.permute.xlu0 %622
    %v625 = vmul.f32 %v608, %v623
    %v626 = vld [vmem:[#allocation2 + $0x20] sm:$0xff]
    %v627 = vpack.c.bf16 %v528, %v528
    %629 = vrot.lane.b32.xlu0 %v627, 32
    %v630 = vpop.permute.xlu0 %629
    %v632 = vsel %vm166, %v630, 0
    %634 = vmatpush.bf16.msra.mxu0 0
    %635 = vmatpush.bf16.msra.mxu0 0
    %636 = vmatpush.bf16.msra.mxu0 0
    %637 = vmatpush.bf16.msra.mxu0 0
    %638 = vmatpush.bf16.msra.mxu0 0
    %639 = vmatpush.bf16.msra.mxu0 0
    %640 = vmatpush.bf16.msra.mxu0 %v163
    %641 = vmatpush.bf16.msra.mxu0 %v162
    %642 = vmatmul.bf16.gmra.mxu0 %v632
    %v643 = vpop.f32.mrf.mxu0
    %v644 = vadd.f32 0.0, %v643
    %v645 = vpop.f32.mrf.mxu0
    %646 = vdwg.mxu0
    %v647 = vadd.f32 %v626, %v644
    %v648 = vmul.f32 %v647, 0.5
    %v649 = vsel %vm152, %v647, %v648
    %v650 = vtanh.pop %v649
    %v651 = vmul.f32 %v650, 0.5
    %v652 = vadd.f32 %v651, 0.5
    %v653 = vsel %vm152, %v650, %v652
    %v654 = vmul.f32 %v653, %v522
    %656 = vrot.lane.b32.xlu0 %v653, 64
    %v657 = vpop.permute.xlu0 %656
    %v659 = vmul.f32 %v653, %v657
    %661 = vrot.lane.b32.xlu0 %v659, 32
    %v662 = vpop.permute.xlu0 %661
    %v664 = vadd.f32 %v654, %v662
    %v665 = vtanh.pop %v664
    %667 = vrot.lane.b32.xlu0 %v665, 64
    %v668 = vpop.permute.xlu0 %667
    %v670 = vmul.f32 %v653, %v668
    %672 = vrot.lane.b32.xlu0 %v528, 32
    %v673 = vpop.permute.xlu0 %672
    %676 = vrot.lane.b32.xlu0 %v577, 64
    %v677 = vpop.permute.xlu0 %676
    %v679 = vsel %vm166, %v673, %v677
    %v680 = vpack.c.bf16 %v679, %v679
    %v682 = vsel %vm282, %v680, 0
    %684 = vmatpush.bf16.msra.mxu0 0
    %685 = vmatpush.bf16.msra.mxu0 0
    %686 = vmatpush.bf16.msra.mxu0 0
    %687 = vmatpush.bf16.msra.mxu0 0
    %688 = vmatpush.bf16.msra.mxu0 %v277
    %689 = vmatpush.bf16.msra.mxu0 %v276
    %690 = vmatpush.bf16.msra.mxu0 %v275
    %691 = vmatpush.bf16.msra.mxu0 %v274
    %692 = vmatmul.bf16.gmra.mxu0 %v682
    %v693 = vpop.f32.mrf.mxu0
    %v694 = vadd.f32 %v59, %v693
    %v695 = vpop.f32.mrf.mxu0
    %696 = vdwg.mxu0
    %v697 = vmul.f32 %v694, 0.5
    %v698 = vsel %vm152, %v694, %v697
    %v699 = vtanh.pop %v698
    %v700 = vmul.f32 %v699, 0.5
    %v701 = vadd.f32 %v700, 0.5
    %v702 = vsel %vm152, %v699, %v701
    %v703 = vmul.f32 %v702, %v571
    %705 = vrot.lane.b32.xlu0 %v702, 64
    %v706 = vpop.permute.xlu0 %705
    %v708 = vmul.f32 %v702, %v706
    %710 = vrot.lane.b32.xlu0 %v708, 32
    %v711 = vpop.permute.xlu0 %710
    %v713 = vadd.f32 %v703, %v711
    %v714 = vtanh.pop %v713
    %716 = vrot.lane.b32.xlu0 %v714, 64
    %v717 = vpop.permute.xlu0 %716
    %v719 = vmul.f32 %v702, %v717
    %720 = vrot.lane.b32.xlu0 %v577, 32
    %v721 = vpop.permute.xlu0 %720
    %724 = vrot.lane.b32.xlu0 %v625, 64
    %v725 = vpop.permute.xlu0 %724
    %v727 = vsel %vm166, %v721, %v725
    %v728 = vpack.c.bf16 %v727, %v727
    %v730 = vsel %vm282, %v728, 0
    %732 = vmatpush.bf16.msra.mxu0 0
    %733 = vmatpush.bf16.msra.mxu0 0
    %734 = vmatpush.bf16.msra.mxu0 0
    %735 = vmatpush.bf16.msra.mxu0 0
    %736 = vmatpush.bf16.msra.mxu0 %v440
    %737 = vmatpush.bf16.msra.mxu0 %v439
    %738 = vmatpush.bf16.msra.mxu0 %v438
    %739 = vmatpush.bf16.msra.mxu0 %v437
    %740 = vmatmul.bf16.gmra.mxu0 %v730
    %v741 = vpop.f32.mrf.mxu0
    %v742 = vadd.f32 %v61, %v741
    %v743 = vpop.f32.mrf.mxu0
    %744 = vdwg.mxu0
    %v745 = vmul.f32 %v742, 0.5
    %v746 = vsel %vm152, %v742, %v745
    %v747 = vtanh.pop %v746
    %v748 = vmul.f32 %v747, 0.5
    %v749 = vadd.f32 %v748, 0.5
    %v750 = vsel %vm152, %v747, %v749
    %v751 = vmul.f32 %v750, %v619
    %753 = vrot.lane.b32.xlu0 %v750, 64
    %v754 = vpop.permute.xlu0 %753
    %v756 = vmul.f32 %v750, %v754
    %758 = vrot.lane.b32.xlu0 %v756, 32
    %v759 = vpop.permute.xlu0 %758
    %v761 = vadd.f32 %v751, %v759
    %v762 = vtanh.pop %v761
    %764 = vrot.lane.b32.xlu0 %v762, 64
    %v765 = vpop.permute.xlu0 %764
    %v767 = vmul.f32 %v750, %v765
    %v768 = vld [vmem:[#allocation2 + $0x28] sm:$0xff]
    %v769 = vpack.c.bf16 %v670, %v670
    %771 = vrot.lane.b32.xlu0 %v769, 32
    %v772 = vpop.permute.xlu0 %771
    %v774 = vsel %vm166, %v772, 0
    %776 = vmatpush.bf16.msra.mxu0 0
    %777 = vmatpush.bf16.msra.mxu0 0
    %778 = vmatpush.bf16.msra.mxu0 0
    %779 = vmatpush.bf16.msra.mxu0 0
    %780 = vmatpush.bf16.msra.mxu0 0
    %781 = vmatpush.bf16.msra.mxu0 0
    %782 = vmatpush.bf16.msra.mxu0 %v163
    %783 = vmatpush.bf16.msra.mxu0 %v162
    %784 = vmatmul.bf16.gmra.mxu0 %v774
    %v785 = vpop.f32.mrf.mxu0
    %v786 = vadd.f32 0.0, %v785
    %v787 = vpop.f32.mrf.mxu0
    %788 = vdwg.mxu0
    %v789 = vadd.f32 %v768, %v786
    %v790 = vmul.f32 %v789, 0.5
    %v791 = vsel %vm152, %v789, %v790
    %v792 = vtanh.pop %v791
    %v793 = vmul.f32 %v792, 0.5
    %v794 = vadd.f32 %v793, 0.5
    %v795 = vsel %vm152, %v792, %v794
    %v796 = vmul.f32 %v795, %v664
    %798 = vrot.lane.b32.xlu0 %v795, 64
    %v799 = vpop.permute.xlu0 %798
    %v801 = vmul.f32 %v795, %v799
    %803 = vrot.lane.b32.xlu0 %v801, 32
    %v804 = vpop.permute.xlu0 %803
    %v806 = vadd.f32 %v796, %v804
    %v807 = vtanh.pop %v806
    %809 = vrot.lane.b32.xlu0 %v807, 64
    %v810 = vpop.permute.xlu0 %809
    %v812 = vmul.f32 %v795, %v810
    %814 = vrot.lane.b32.xlu0 %v670, 32
    %v815 = vpop.permute.xlu0 %814
    %818 = vrot.lane.b32.xlu0 %v719, 64
    %v819 = vpop.permute.xlu0 %818
    %v821 = vsel %vm166, %v815, %v819
    %v822 = vpack.c.bf16 %v821, %v821
    %v824 = vsel %vm282, %v822, 0
    %826 = vmatpush.bf16.msra.mxu0 0
    %827 = vmatpush.bf16.msra.mxu0 0
    %828 = vmatpush.bf16.msra.mxu0 0
    %829 = vmatpush.bf16.msra.mxu0 0
    %830 = vmatpush.bf16.msra.mxu0 %v277
    %831 = vmatpush.bf16.msra.mxu0 %v276
    %832 = vmatpush.bf16.msra.mxu0 %v275
    %833 = vmatpush.bf16.msra.mxu0 %v274
    %834 = vmatmul.bf16.gmra.mxu0 %v824
    %v835 = vpop.f32.mrf.mxu0
    %v836 = vadd.f32 %v59, %v835
    %v837 = vpop.f32.mrf.mxu0
    %838 = vdwg.mxu0
    %v839 = vmul.f32 %v836, 0.5
    %v840 = vsel %vm152, %v836, %v839
    %v841 = vtanh.pop %v840
    %v842 = vmul.f32 %v841, 0.5
    %v843 = vadd.f32 %v842, 0.5
    %v844 = vsel %vm152, %v841, %v843
    %v845 = vmul.f32 %v844, %v713
    %847 = vrot.lane.b32.xlu0 %v844, 64
    %v848 = vpop.permute.xlu0 %847
    %v850 = vmul.f32 %v844, %v848
    %852 = vrot.lane.b32.xlu0 %v850, 32
    %v853 = vpop.permute.xlu0 %852
    %v855 = vadd.f32 %v845, %v853
    %v856 = vtanh.pop %v855
    %858 = vrot.lane.b32.xlu0 %v856, 64
    %v859 = vpop.permute.xlu0 %858
    %v861 = vmul.f32 %v844, %v859
    %862 = vrot.lane.b32.xlu0 %v719, 32
    %v863 = vpop.permute.xlu0 %862
    %866 = vrot.lane.b32.xlu0 %v767, 64
    %v867 = vpop.permute.xlu0 %866
    %v869 = vsel %vm166, %v863, %v867
    %v870 = vpack.c.bf16 %v869, %v869
    %v872 = vsel %vm282, %v870, 0
    %874 = vmatpush.bf16.msra.mxu0 0
    %875 = vmatpush.bf16.msra.mxu0 0
    %876 = vmatpush.bf16.msra.mxu0 0
    %877 = vmatpush.bf16.msra.mxu0 0
    %878 = vmatpush.bf16.msra.mxu0 %v440
    %879 = vmatpush.bf16.msra.mxu0 %v439
    %880 = vmatpush.bf16.msra.mxu0 %v438
    %881 = vmatpush.bf16.msra.mxu0 %v437
    %882 = vmatmul.bf16.gmra.mxu0 %v872
    %v883 = vpop.f32.mrf.mxu0
    %v884 = vadd.f32 %v61, %v883
    %v885 = vpop.f32.mrf.mxu0
    %886 = vdwg.mxu0
    %v887 = vmul.f32 %v884, 0.5
    %v888 = vsel %vm152, %v884, %v887
    %v889 = vtanh.pop %v888
    %v890 = vmul.f32 %v889, 0.5
    %v891 = vadd.f32 %v890, 0.5
    %v892 = vsel %vm152, %v889, %v891
    %v893 = vmul.f32 %v892, %v761
    %895 = vrot.lane.b32.xlu0 %v892, 64
    %v896 = vpop.permute.xlu0 %895
    %v898 = vmul.f32 %v892, %v896
    %900 = vrot.lane.b32.xlu0 %v898, 32
    %v901 = vpop.permute.xlu0 %900
    %v903 = vadd.f32 %v893, %v901
    %v904 = vtanh.pop %v903
    %906 = vrot.lane.b32.xlu0 %v904, 64
    %v907 = vpop.permute.xlu0 %906
    %v909 = vmul.f32 %v892, %v907
    %v910 = vld [vmem:[#allocation2 + $0x30] sm:$0xff]
    %v911 = vpack.c.bf16 %v812, %v812
    %913 = vrot.lane.b32.xlu0 %v911, 32
    %v914 = vpop.permute.xlu0 %913
    %v916 = vsel %vm166, %v914, 0
    %918 = vmatpush.bf16.msra.mxu0 0
    %919 = vmatpush.bf16.msra.mxu0 0
    %920 = vmatpush.bf16.msra.mxu0 0
    %921 = vmatpush.bf16.msra.mxu0 0
    %922 = vmatpush.bf16.msra.mxu0 0
    %923 = vmatpush.bf16.msra.mxu0 0
    %924 = vmatpush.bf16.msra.mxu0 %v163
    %925 = vmatpush.bf16.msra.mxu0 %v162
    %926 = vmatmul.bf16.gmra.mxu0 %v916
    %v927 = vpop.f32.mrf.mxu0
    %v928 = vadd.f32 0.0, %v927
    %v929 = vpop.f32.mrf.mxu0
    %930 = vdwg.mxu0
    %v931 = vadd.f32 %v910, %v928
    %v932 = vmul.f32 %v931, 0.5
    %v933 = vsel %vm152, %v931, %v932
    %v934 = vtanh.pop %v933
    %v935 = vmul.f32 %v934, 0.5
    %v936 = vadd.f32 %v935, 0.5
    %v937 = vsel %vm152, %v934, %v936
    %v938 = vmul.f32 %v937, %v806
    %940 = vrot.lane.b32.xlu0 %v937, 64
    %v941 = vpop.permute.xlu0 %940
    %v943 = vmul.f32 %v937, %v941
    %945 = vrot.lane.b32.xlu0 %v943, 32
    %v946 = vpop.permute.xlu0 %945
    %v948 = vadd.f32 %v938, %v946
    %v949 = vtanh.pop %v948
    %951 = vrot.lane.b32.xlu0 %v949, 64
    %v952 = vpop.permute.xlu0 %951
    %v954 = vmul.f32 %v937, %v952
    %956 = vrot.lane.b32.xlu0 %v812, 32
    %v957 = vpop.permute.xlu0 %956
    %960 = vrot.lane.b32.xlu0 %v861, 64
    %v961 = vpop.permute.xlu0 %960
    %v963 = vsel %vm166, %v957, %v961
    %v964 = vpack.c.bf16 %v963, %v963
    %v966 = vsel %vm282, %v964, 0
    %968 = vmatpush.bf16.msra.mxu0 0
    %969 = vmatpush.bf16.msra.mxu0 0
    %970 = vmatpush.bf16.msra.mxu0 0
    %971 = vmatpush.bf16.msra.mxu0 0
    %972 = vmatpush.bf16.msra.mxu0 %v277
    %973 = vmatpush.bf16.msra.mxu0 %v276
    %974 = vmatpush.bf16.msra.mxu0 %v275
    %975 = vmatpush.bf16.msra.mxu0 %v274
    %976 = vmatmul.bf16.gmra.mxu0 %v966
    %v977 = vpop.f32.mrf.mxu0
    %v978 = vadd.f32 %v59, %v977
    %v979 = vpop.f32.mrf.mxu0
    %980 = vdwg.mxu0
    %v981 = vmul.f32 %v978, 0.5
    %v982 = vsel %vm152, %v978, %v981
    %v983 = vtanh.pop %v982
    %v984 = vmul.f32 %v983, 0.5
    %v985 = vadd.f32 %v984, 0.5
    %v986 = vsel %vm152, %v983, %v985
    %v987 = vmul.f32 %v986, %v855
    %989 = vrot.lane.b32.xlu0 %v986, 64
    %v990 = vpop.permute.xlu0 %989
    %v992 = vmul.f32 %v986, %v990
    %994 = vrot.lane.b32.xlu0 %v992, 32
    %v995 = vpop.permute.xlu0 %994
    %v997 = vadd.f32 %v987, %v995
    %v998 = vtanh.pop %v997
    %1000 = vrot.lane.b32.xlu0 %v998, 64
    %v1001 = vpop.permute.xlu0 %1000
    %v1003 = vmul.f32 %v986, %v1001
    %1004 = vrot.lane.b32.xlu0 %v861, 32
    %v1005 = vpop.permute.xlu0 %1004
    %1008 = vrot.lane.b32.xlu0 %v909, 64
    %v1009 = vpop.permute.xlu0 %1008
    %v1011 = vsel %vm166, %v1005, %v1009
    %v1012 = vpack.c.bf16 %v1011, %v1011
    %v1014 = vsel %vm282, %v1012, 0
    %1016 = vmatpush.bf16.msra.mxu0 0
    %1017 = vmatpush.bf16.msra.mxu0 0
    %1018 = vmatpush.bf16.msra.mxu0 0
    %1019 = vmatpush.bf16.msra.mxu0 0
    %1020 = vmatpush.bf16.msra.mxu0 %v440
    %1021 = vmatpush.bf16.msra.mxu0 %v439
    %1022 = vmatpush.bf16.msra.mxu0 %v438
    %1023 = vmatpush.bf16.msra.mxu0 %v437
    %1024 = vmatmul.bf16.gmra.mxu0 %v1014
    %v1025 = vpop.f32.mrf.mxu0
    %v1026 = vadd.f32 %v61, %v1025
    %v1027 = vpop.f32.mrf.mxu0
    %1028 = vdwg.mxu0
    %v1029 = vmul.f32 %v1026, 0.5
    %v1030 = vsel %vm152, %v1026, %v1029
    %v1031 = vtanh.pop %v1030
    %v1032 = vmul.f32 %v1031, 0.5
    %v1033 = vadd.f32 %v1032, 0.5
    %v1034 = vsel %vm152, %v1031, %v1033
    %v1035 = vmul.f32 %v1034, %v903
    %1037 = vrot.lane.b32.xlu0 %v1034, 64
    %v1038 = vpop.permute.xlu0 %1037
    %v1040 = vmul.f32 %v1034, %v1038
    %1042 = vrot.lane.b32.xlu0 %v1040, 32
    %v1043 = vpop.permute.xlu0 %1042
    %v1045 = vadd.f32 %v1035, %v1043
    %v1046 = vtanh.pop %v1045
    %1048 = vrot.lane.b32.xlu0 %v1046, 64
    %v1049 = vpop.permute.xlu0 %1048
    %v1051 = vmul.f32 %v1034, %v1049
    %v1052 = vld [vmem:[#allocation2 + $0x38] sm:$0xff]
    %v1053 = vpack.c.bf16 %v954, %v954
    %1055 = vrot.lane.b32.xlu0 %v1053, 32
    %v1056 = vpop.permute.xlu0 %1055
    %v1058 = vsel %vm166, %v1056, 0
    %1060 = vmatpush.bf16.msra.mxu0 0
    %1061 = vmatpush.bf16.msra.mxu0 0
    %1062 = vmatpush.bf16.msra.mxu0 0
    %1063 = vmatpush.bf16.msra.mxu0 0
    %1064 = vmatpush.bf16.msra.mxu0 0
    %1065 = vmatpush.bf16.msra.mxu0 0
    %1066 = vmatpush.bf16.msra.mxu0 %v163
    %1067 = vmatpush.bf16.msra.mxu0 %v162
    %1068 = vmatmul.bf16.gmra.mxu0 %v1058
    %v1069 = vpop.f32.mrf.mxu0
    %v1070 = vadd.f32 0.0, %v1069
    %v1071 = vpop.f32.mrf.mxu0
    %1072 = vdwg.mxu0
    %v1073 = vadd.f32 %v1052, %v1070
    %v1074 = vmul.f32 %v1073, 0.5
    %v1075 = vsel %vm152, %v1073, %v1074
    %v1076 = vtanh.pop %v1075
    %v1077 = vmul.f32 %v1076, 0.5
    %v1078 = vadd.f32 %v1077, 0.5
    %v1079 = vsel %vm152, %v1076, %v1078
    %v1080 = vmul.f32 %v1079, %v948
    %1082 = vrot.lane.b32.xlu0 %v1079, 64
    %v1083 = vpop.permute.xlu0 %1082
    %v1085 = vmul.f32 %v1079, %v1083
    %1087 = vrot.lane.b32.xlu0 %v1085, 32
    %v1088 = vpop.permute.xlu0 %1087
    %v1090 = vadd.f32 %v1080, %v1088
    %v1091 = vtanh.pop %v1090
    %1093 = vrot.lane.b32.xlu0 %v1091, 64
    %v1094 = vpop.permute.xlu0 %1093
    %v1096 = vmul.f32 %v1079, %v1094
    %1098 = vrot.lane.b32.xlu0 %v954, 32
    %v1099 = vpop.permute.xlu0 %1098
    %1102 = vrot.lane.b32.xlu0 %v1003, 64
    %v1103 = vpop.permute.xlu0 %1102
    %v1105 = vsel %vm166, %v1099, %v1103
    %v1106 = vpack.c.bf16 %v1105, %v1105
    %v1108 = vsel %vm282, %v1106, 0
    %1110 = vmatpush.bf16.msra.mxu0 0
    %1111 = vmatpush.bf16.msra.mxu0 0
    %1112 = vmatpush.bf16.msra.mxu0 0
    %1113 = vmatpush.bf16.msra.mxu0 0
    %1114 = vmatpush.bf16.msra.mxu0 %v277
    %1115 = vmatpush.bf16.msra.mxu0 %v276
    %1116 = vmatpush.bf16.msra.mxu0 %v275
    %1117 = vmatpush.bf16.msra.mxu0 %v274
    %1118 = vmatmul.bf16.gmra.mxu0 %v1108
    %v1119 = vpop.f32.mrf.mxu0
    %v1120 = vadd.f32 %v59, %v1119
    %v1121 = vpop.f32.mrf.mxu0
    %1122 = vdwg.mxu0
    %v1123 = vmul.f32 %v1120, 0.5
    %v1124 = vsel %vm152, %v1120, %v1123
    %v1125 = vtanh.pop %v1124
    %v1126 = vmul.f32 %v1125, 0.5
    %v1127 = vadd.f32 %v1126, 0.5
    %v1128 = vsel %vm152, %v1125, %v1127
    %v1129 = vmul.f32 %v1128, %v997
    %1131 = vrot.lane.b32.xlu0 %v1128, 64
    %v1132 = vpop.permute.xlu0 %1131
    %v1134 = vmul.f32 %v1128, %v1132
    %1136 = vrot.lane.b32.xlu0 %v1134, 32
    %v1137 = vpop.permute.xlu0 %1136
    %v1139 = vadd.f32 %v1129, %v1137
    %v1140 = vtanh.pop %v1139
    %1142 = vrot.lane.b32.xlu0 %v1140, 64
    %v1143 = vpop.permute.xlu0 %1142
    %v1145 = vmul.f32 %v1128, %v1143
    %1146 = vrot.lane.b32.xlu0 %v1003, 32
    %v1147 = vpop.permute.xlu0 %1146
    %1150 = vrot.lane.b32.xlu0 %v1051, 64
    %v1151 = vpop.permute.xlu0 %1150
    %v1153 = vsel %vm166, %v1147, %v1151
    %v1154 = vpack.c.bf16 %v1153, %v1153
    %v1156 = vsel %vm282, %v1154, 0
    %1158 = vmatpush.bf16.msra.mxu0 0
    %1159 = vmatpush.bf16.msra.mxu0 0
    %1160 = vmatpush.bf16.msra.mxu0 0
    %1161 = vmatpush.bf16.msra.mxu0 0
    %1162 = vmatpush.bf16.msra.mxu0 %v440
    %1163 = vmatpush.bf16.msra.mxu0 %v439
    %1164 = vmatpush.bf16.msra.mxu0 %v438
    %1165 = vmatpush.bf16.msra.mxu0 %v437
    %1166 = vmatmul.bf16.gmra.mxu0 %v1156
    %v1167 = vpop.f32.mrf.mxu0
    %v1168 = vadd.f32 %v61, %v1167
    %v1169 = vpop.f32.mrf.mxu0
    %1170 = vdwg.mxu0
    %v1171 = vmul.f32 %v1168, 0.5
    %v1172 = vsel %vm152, %v1168, %v1171
    %v1173 = vtanh.pop %v1172
    %v1174 = vmul.f32 %v1173, 0.5
    %v1175 = vadd.f32 %v1174, 0.5
    %v1176 = vsel %vm152, %v1173, %v1175
    %v1177 = vmul.f32 %v1176, %v1045
    %1179 = vrot.lane.b32.xlu0 %v1176, 64
    %v1180 = vpop.permute.xlu0 %1179
    %v1182 = vmul.f32 %v1176, %v1180
    %1184 = vrot.lane.b32.xlu0 %v1182, 32
    %v1185 = vpop.permute.xlu0 %1184
    %v1187 = vadd.f32 %v1177, %v1185
    %v1188 = vtanh.pop %v1187
    %1190 = vrot.lane.b32.xlu0 %v1188, 64
    %v1191 = vpop.permute.xlu0 %1190
    %v1193 = vmul.f32 %v1176, %v1191
    %1195 = vrot.lane.b32.xlu0 %v1096, 32
    %v1196 = vpop.permute.xlu0 %1195
    %1199 = vrot.lane.b32.xlu0 %v1145, 64
    %v1200 = vpop.permute.xlu0 %1199
    %v1202 = vsel %vm166, %v1196, %v1200
    %v1203 = vpack.c.bf16 %v1202, %v1202
    %v1205 = vsel %vm282, %v1203, 0
    %1207 = vmatpush.bf16.msra.mxu0 0
    %1208 = vmatpush.bf16.msra.mxu0 0
    %1209 = vmatpush.bf16.msra.mxu0 0
    %1210 = vmatpush.bf16.msra.mxu0 0
    %1211 = vmatpush.bf16.msra.mxu0 %v277
    %1212 = vmatpush.bf16.msra.mxu0 %v276
    %1213 = vmatpush.bf16.msra.mxu0 %v275
    %1214 = vmatpush.bf16.msra.mxu0 %v274
    %1215 = vmatmul.bf16.gmra.mxu0 %v1205
    %v1216 = vpop.f32.mrf.mxu0
    %v1217 = vadd.f32 %v59, %v1216
    %v1218 = vpop.f32.mrf.mxu0
    %1219 = vdwg.mxu0
    %v1220 = vmul.f32 %v1217, 0.5
    %v1221 = vsel %vm152, %v1217, %v1220
    %v1222 = vtanh.pop %v1221
    %v1223 = vmul.f32 %v1222, 0.5
    %v1224 = vadd.f32 %v1223, 0.5
    %v1225 = vsel %vm152, %v1222, %v1224
    %v1226 = vmul.f32 %v1225, %v1139
    %1228 = vrot.lane.b32.xlu0 %v1225, 64
    %v1229 = vpop.permute.xlu0 %1228
    %v1231 = vmul.f32 %v1225, %v1229
    %1233 = vrot.lane.b32.xlu0 %v1231, 32
    %v1234 = vpop.permute.xlu0 %1233
    %v1236 = vadd.f32 %v1226, %v1234
    %v1237 = vtanh.pop %v1236
    %1239 = vrot.lane.b32.xlu0 %v1237, 64
    %v1240 = vpop.permute.xlu0 %1239
    %v1242 = vmul.f32 %v1225, %v1240
    %1243 = vrot.lane.b32.xlu0 %v1145, 32
    %v1244 = vpop.permute.xlu0 %1243
    %1247 = vrot.lane.b32.xlu0 %v1193, 64
    %v1248 = vpop.permute.xlu0 %1247
    %v1250 = vsel %vm166, %v1244, %v1248
    %v1251 = vpack.c.bf16 %v1250, %v1250
    %v1253 = vsel %vm282, %v1251, 0
    %1255 = vmatpush.bf16.msra.mxu0 0
    %1256 = vmatpush.bf16.msra.mxu0 0
    %1257 = vmatpush.bf16.msra.mxu0 0
    %1258 = vmatpush.bf16.msra.mxu0 0
    %1259 = vmatpush.bf16.msra.mxu0 %v440
    %1260 = vmatpush.bf16.msra.mxu0 %v439
    %1261 = vmatpush.bf16.msra.mxu0 %v438
    %1262 = vmatpush.bf16.msra.mxu0 %v437
    %1263 = vmatmul.bf16.gmra.mxu0 %v1253
    %v1264 = vpop.f32.mrf.mxu0
    %v1265 = vadd.f32 %v61, %v1264
    %v1266 = vpop.f32.mrf.mxu0
    %1267 = vdwg.mxu0
    %v1268 = vmul.f32 %v1265, 0.5
    %v1269 = vsel %vm152, %v1265, %v1268
    %v1270 = vtanh.pop %v1269
    %v1271 = vmul.f32 %v1270, 0.5
    %v1272 = vadd.f32 %v1271, 0.5
    %v1273 = vsel %vm152, %v1270, %v1272
    %v1274 = vmul.f32 %v1273, %v1187
    %1276 = vrot.lane.b32.xlu0 %v1273, 64
    %v1277 = vpop.permute.xlu0 %1276
    %v1279 = vmul.f32 %v1273, %v1277
    %1281 = vrot.lane.b32.xlu0 %v1279, 32
    %v1282 = vpop.permute.xlu0 %1281
    %v1284 = vadd.f32 %v1274, %v1282
    %v1285 = vtanh.pop %v1284
    %1287 = vrot.lane.b32.xlu0 %v1285, 64
    %v1288 = vpop.permute.xlu0 %1287
    %v1290 = vmul.f32 %v1273, %v1288
    %1292 = vrot.lane.b32.xlu0 %v1242, 32
    %v1293 = vpop.permute.xlu0 %1292
    %1296 = vrot.lane.b32.xlu0 %v1290, 64
    %v1297 = vpop.permute.xlu0 %1296
    %v1299 = vsel %vm166, %v1293, %v1297
    %v1300 = vpack.c.bf16 %v1299, %v1299
    %v1302 = vsel %vm282, %v1300, 0
    %1304 = vmatpush.bf16.msra.mxu0 0
    %1305 = vmatpush.bf16.msra.mxu0 0
    %1306 = vmatpush.bf16.msra.mxu0 0
    %1307 = vmatpush.bf16.msra.mxu0 0
    %1308 = vmatpush.bf16.msra.mxu0 %v440
    %1309 = vmatpush.bf16.msra.mxu0 %v439
    %1310 = vmatpush.bf16.msra.mxu0 %v438
    %1311 = vmatpush.bf16.msra.mxu0 %v437
    %1312 = vmatmul.bf16.gmra.mxu0 %v1302
    %v1313 = vpop.f32.mrf.mxu0
    %v1314 = vadd.f32 %v61, %v1313
    %v1315 = vpop.f32.mrf.mxu0
    %1316 = vdwg.mxu0
    %v1317 = vmul.f32 %v1314, 0.5
    %v1318 = vsel %vm152, %v1314, %v1317
    %v1319 = vtanh.pop %v1318
    %v1320 = vmul.f32 %v1319, 0.5
    %v1321 = vadd.f32 %v1320, 0.5
    %v1322 = vsel %vm152, %v1319, %v1321
    %v1323 = vmul.f32 %v1322, %v1284
    %1325 = vrot.lane.b32.xlu0 %v1322, 64
    %v1326 = vpop.permute.xlu0 %1325
    %v1328 = vmul.f32 %v1322, %v1326
    %1330 = vrot.lane.b32.xlu0 %v1328, 32
    %v1331 = vpop.permute.xlu0 %1330
    %v1333 = vadd.f32 %v1323, %v1331
    %v1334 = vtanh.pop %v1333
    %1336 = vrot.lane.b32.xlu0 %v1334, 64
    %v1337 = vpop.permute.xlu0 %1336
    %v1339 = vmul.f32 %v1322, %v1337
    %v1340 = vpack.c.bf16 %v1339, %v1339
    %v1341 = vperm.slane %v62, 0
    %1343 = vrot.lane.b32.xlu0 %v1340, 32
    %v1344 = vpop.permute.xlu0 %1343
    %v1349 = vunpack.c.l.b16 %v53
    %v1350 = vunpack.c.l.b16 %v54
    %v1351 = vunpack.c.l.b16 %v55
    %v1352 = vunpack.c.l.b16 %v56
    %v1353 = vpack.c.b16 %v1350, %v1349
    %v1354 = vpack.c.b16 %v1352, %v1351
    %v1358 = vsel %vm166, %v1344, 0
    %1360 = vmatpush.bf16.msra.mxu0 0
    %1361 = vmatpush.bf16.msra.mxu0 0
    %1362 = vmatpush.bf16.msra.mxu0 0
    %1363 = vmatpush.bf16.msra.mxu0 0
    %1364 = vmatpush.bf16.msra.mxu0 0
    %1365 = vmatpush.bf16.msra.mxu0 0
    %1366 = vmatpush.bf16.msra.mxu0 %v1354
    %1367 = vmatpush.bf16.msra.mxu0 %v1353
    %1368 = vmatmul.bf16.gmra.mxu0 %v1358
    %v1369 = vpop.f32.mrf.mxu0
    %v1370 = vadd.f32 %v1341, %v1369
    %v1371 = vpop.f32.mrf.mxu0
    %1372 = vdwg.mxu0
    %1373 = vst [vmem:[%s3] sm:$0xff] %v1370
    // Predicated region
    $region18: #{neural_network_forward.1} parent=1 // pred_check
      _
    $region19: #{neural_network_forward.1} parent=1 // pred_check_branch
      %1375 = sbr.rel (0) target = $region21
    $region20: #{neural_network_forward.1} parent=1 // pred_region
      _
    $region21: #{neural_network_forward.1} parent=1 // pred_fallthru
      _
    // Predicated region
    $region22: #{neural_network_forward.1} parent=1 // pred_check
      _
    $region23: #{neural_network_forward.1} parent=1 // pred_check_branch
      %1377 = sbr.rel (0) target = $region25
    $region24: #{neural_network_forward.1} parent=1 // pred_region
      _
    $region25: #{neural_network_forward.1} parent=1 // pred_fallthru
      _
    %1378 = vsyncpa [#allocation4], 1

</llo_original>
